<compile_context>
chip_gen: v5e
topology: v5e:2x2
jax: 0.10.0
libtpu: 0.0.40
codegen_flags: <defaults>
</compile_context>

<pallas_src>
import math

import jax
import jax.numpy as jnp
from jax.experimental import pallas as pl
from jax.experimental.pallas import tpu as pltpu

# ------------------------------ configuration -------------------------------
BATCH_SIZE = 4
MAX_SENT_LEN = 16
WORD_DIM = 32
VOCAB_SIZE = 50
CLASS_SIZE = 5
HIDDEN_SIZE = 50          # per direction (hard-coded in the PyTorch module)
HIDDEN_OUTPUT = 100       # hidden Linear output  (hard-coded in the module)

VOCAB_FULL = VOCAB_SIZE + 2   # + <unk>, <pad> rows (padding_idx = VOCAB_SIZE+1)
HP = 128                      # lane-padded per-direction hidden size
OP = 128                      # lane-padded hidden-layer output
CP = 128                      # lane-padded class dim (logits written dense)


def _sigmoid(x):
  return 1.0 / (1.0 + jnp.exp(-x))


# ------------------------------ fused kernel --------------------------------
def _rcnn_kernel(inp_ref, wv_ref,
                 wih_f_ref, whh_f_ref, bg_f_ref,
                 wih_b_ref, whh_b_ref, bg_b_ref,
                 wh_f_ref, wh_x_ref, wh_b_ref, bh_ref,
                 wfc_ref, bfc_ref,
                 out_ref,
                 xs_ref, hf_ref, hb_ref):
  L, B = inp_ref.shape
  V, D = wv_ref.shape

  # ---- embedding lookup, in-kernel (one-hot matmul on the MXU) ----
  idx = inp_ref[...]                                           # (L, B) int32
  iota_v = jax.lax.broadcasted_iota(jnp.int32, (L, B, V), 2)
  onehot = (idx[:, :, None] == iota_v).astype(jnp.float32)     # (L, B, V)
  x_flat = jnp.dot(onehot.reshape(L * B, V), wv_ref[...],
                   preferred_element_type=jnp.float32)         # (L*B, D)
  xs_ref[...] = x_flat.reshape(L, B, D)
  # dropout p=0.3 -> eval-mode identity

  # ---- BiLSTM; gates packed [i | f | g | o], each gate padded to HP lanes ----
  wih_f = wih_f_ref[...]; whh_f = whh_f_ref[...]; bg_f = bg_f_ref[...]
  wih_b = wih_b_ref[...]; whh_b = whh_b_ref[...]; bg_b = bg_b_ref[...]

  def lstm_step(x_t, h, c, wih, whh, bg):
    g = (jnp.dot(x_t, wih, preferred_element_type=jnp.float32)
         + jnp.dot(h, whh, preferred_element_type=jnp.float32) + bg)
    i = _sigmoid(g[:, 0 * HP:1 * HP])        # 128-aligned static slices
    f = _sigmoid(g[:, 1 * HP:2 * HP])
    gg = jnp.tanh(g[:, 2 * HP:3 * HP])
    o = _sigmoid(g[:, 3 * HP:4 * HP])
    c_new = f * c + i * gg
    h_new = o * jnp.tanh(c_new)
    return h_new, c_new

  zeros = jnp.zeros((B, HP), jnp.float32)

  def fwd_body(t, carry):
    h, c = lstm_step(xs_ref[t], carry[0], carry[1], wih_f, whh_f, bg_f)
    hf_ref[t] = h
    return (h, c)

  jax.lax.fori_loop(0, L, fwd_body, (zeros, zeros))

  def bwd_body(s, carry):
    t = L - 1 - s
    h, c = lstm_step(xs_ref[t], carry[0], carry[1], wih_b, whh_b, bg_b)
    hb_ref[t] = h
    return (h, c)

  jax.lax.fori_loop(0, L, bwd_body, (zeros, zeros))

  # ---- cat([h_fwd, x, h_bwd]) -> Linear -> tanh -> max over time ----
  # concat expressed as three matmuls against row-slices of W_hidden, so no
  # lane-unaligned concatenate is ever materialized.
  hf = hf_ref[...].reshape(L * B, HP)
  hb = hb_ref[...].reshape(L * B, HP)
  xf = xs_ref[...].reshape(L * B, D)
  z = jnp.tanh(
      jnp.dot(hf, wh_f_ref[...], preferred_element_type=jnp.float32)
      + jnp.dot(xf, wh_x_ref[...], preferred_element_type=jnp.float32)
      + jnp.dot(hb, wh_b_ref[...], preferred_element_type=jnp.float32)
      + bh_ref[...])                                           # (L*B, OP)
  feats = jnp.max(z.reshape(L, B, OP), axis=0)                 # (B, OP)
  # dropout p=0.5 -> eval-mode identity

  # ---- classifier: lane-dense padded logits (real classes in cols [:C]) ----
  out_ref[...] = (jnp.dot(feats, wfc_ref[...],
                          preferred_element_type=jnp.float32) + bfc_ref[...])


# ------------------------------ kernel wrapper -------------------------------
def rcnn_forward(inp, kp):
  B, L = inp.shape
  D = kp["wv"].shape[1]
  vmem = lambda: pl.BlockSpec(memory_space=pltpu.MemorySpace.VMEM)
  out = pl.pallas_call(
      _rcnn_kernel,
      out_shape=jax.ShapeDtypeStruct((B, CP), jnp.float32),
      in_specs=[vmem() for _ in range(14)],
      out_specs=vmem(),
      scratch_shapes=[
          pltpu.VMEM((L, B, D), jnp.float32),    # embedded tokens (time-major)
          pltpu.VMEM((L, B, HP), jnp.float32),   # forward hidden states
          pltpu.VMEM((L, B, HP), jnp.float32),   # backward hidden states
      ],
  )(jnp.transpose(inp), kp["wv"],
    kp["wih_f"], kp["whh_f"], kp["bg_f"],
    kp["wih_b"], kp["whh_b"], kp["bg_b"],
    kp["wh_f"], kp["wh_x"], kp["wh_b"], kp["bh"],
    kp["wfc"], kp["bfc"])
  return out[:, :CLASS_SIZE]


# ------------------------------ parameters -----------------------------------
def init_raw_params(key):
  """Unpadded parameters matching the PyTorch module's semantics."""
  H, D, V = HIDDEN_SIZE, WORD_DIM, VOCAB_FULL
  O, C = HIDDEN_OUTPUT, CLASS_SIZE
  ks = jax.random.split(key, 11)
  s_lstm = 1.0 / math.sqrt(H)
  s_hid = 1.0 / math.sqrt(2 * H + D)
  s_fc = 1.0 / math.sqrt(O)
  u = lambda k, shape, s: jax.random.uniform(k, shape, jnp.float32, -s, s)
  wv = 0.1 * jax.random.normal(ks[0], (V, D), dtype=jnp.float32)
  wv = wv.at[V - 1].set(0.0)                    # padding_idx row
  return dict(
      wv=wv,
      # per direction: W_ih^T (D,4H), W_hh^T (H,4H), b_ih + b_hh merged (4H,)
      w_ih_f=u(ks[1], (D, 4 * H), s_lstm), w_hh_f=u(ks[2], (H, 4 * H), s_lstm),
      b_f=u(ks[3], (4 * H,), s_lstm),
      w_ih_b=u(ks[4], (D, 4 * H), s_lstm), w_hh_b=u(ks[5], (H, 4 * H), s_lstm),
      b_b=u(ks[6], (4 * H,), s_lstm),
      # hidden Linear: rows ordered [h_fwd | x | h_bwd] to match torch.cat
      w_hidden=u(ks[7], (2 * H + D, O), s_hid), b_hidden=u(ks[8], (O,), s_hid),
      w_fc=u(ks[9], (O, C), s_fc), b_fc=u(ks[10], (C,), s_fc),
  )


def pack_params(raw):
  """Zero-pad parameters to the lane-dense (128-aligned) kernel layout."""
  H, D = HIDDEN_SIZE, WORD_DIM
  O, C = HIDDEN_OUTPUT, CLASS_SIZE

  def pad_gates(w_ih, w_hh, b):
    wih = jnp.zeros((D, 4 * HP), jnp.float32)
    whh = jnp.zeros((HP, 4 * HP), jnp.float32)
    bg = jnp.zeros((1, 4 * HP), jnp.float32)
    for k in range(4):                            # gate order: i, f, g, o
      wih = wih.at[:, k * HP:k * HP + H].set(w_ih[:, k * H:(k + 1) * H])
      whh = whh.at[:H, k * HP:k * HP + H].set(w_hh[:, k * H:(k + 1) * H])
      bg = bg.at[0, k * HP:k * HP + H].set(b[k * H:(k + 1) * H])
    return wih, whh, bg

  wih_f, whh_f, bg_f = pad_gates(raw["w_ih_f"], raw["w_hh_f"], raw["b_f"])
  wih_b, whh_b, bg_b = pad_gates(raw["w_ih_b"], raw["w_hh_b"], raw["b_b"])

  wh = raw["w_hidden"]
  wh_f = jnp.zeros((HP, OP), jnp.float32).at[:H, :O].set(wh[:H])
  wh_x = jnp.zeros((D, OP), jnp.float32).at[:, :O].set(wh[H:H + D])
  wh_b = jnp.zeros((HP, OP), jnp.float32).at[:H, :O].set(wh[H + D:])
  bh = jnp.zeros((1, OP), jnp.float32).at[0, :O].set(raw["b_hidden"])

  wfc = jnp.zeros((OP, CP), jnp.float32).at[:O, :C].set(raw["w_fc"])
  bfc = jnp.zeros((1, CP), jnp.float32).at[0, :C].set(raw["b_fc"])

  return dict(wv=raw["wv"],
              wih_f=wih_f, whh_f=whh_f, bg_f=bg_f,
              wih_b=wih_b, whh_b=whh_b, bg_b=bg_b,
              wh_f=wh_f, wh_x=wh_x, wh_b=wh_b, bh=bh,
              wfc=wfc, bfc=bfc)


# ------------------------------ pure-JAX reference ---------------------------
def rcnn_reference(inp, rp):
  H = HIDDEN_SIZE
  x = rp["wv"][inp]                               # (B, L, D)
  xs = jnp.transpose(x, (1, 0, 2))                # (L, B, D)

  def run_dir(w_ih, w_hh, b, seq):
    def step(carry, x_t):
      h, c = carry
      g = x_t @ w_ih + h @ w_hh + b
      i = _sigmoid(g[:, :H])
      f = _sigmoid(g[:, H:2 * H])
      gg = jnp.tanh(g[:, 2 * H:3 * H])
      o = _sigmoid(g[:, 3 * H:])
      c = f * c + i * gg
      h = o * jnp.tanh(c)
      return (h, c), h
    h0 = jnp.zeros((x.shape[0], H), jnp.float32)
    _, hs = jax.lax.scan(step, (h0, h0), seq)
    return hs                                     # (L, B, H)

  hf = run_dir(rp["w_ih_f"], rp["w_hh_f"], rp["b_f"], xs)
  hb = run_dir(rp["w_ih_b"], rp["w_hh_b"], rp["b_b"], xs[::-1])[::-1]
  cat = jnp.concatenate([hf, xs, hb], axis=-1)    # (L, B, 2H + D)
  z = jnp.tanh(cat @ rp["w_hidden"] + rp["b_hidden"])
  feats = jnp.max(z, axis=0)                      # (B, O)
  return feats @ rp["w_fc"] + rp["b_fc"]


# ------------------------------------ main ------------------------------------
if __name__ == "__main__":
  key = jax.random.PRNGKey(0)
  pkey, ikey = jax.random.split(key)
  raw = init_raw_params(pkey)
  kp = pack_params(raw)

  # token ids in [0, VOCAB_SIZE], last column forced to the padding index
  inp = jax.random.randint(ikey, (BATCH_SIZE, MAX_SENT_LEN), 0,
                           VOCAB_SIZE + 1, dtype=jnp.int32)
  inp = inp.at[:, -1].set(VOCAB_SIZE + 1)

  logits = jax.block_until_ready(jax.jit(rcnn_forward)(inp, kp))
  ref = jax.block_until_ready(rcnn_reference(inp, raw))

  assert logits.shape == (BATCH_SIZE, CLASS_SIZE)
  assert jnp.allclose(logits, ref, atol=2e-3, rtol=2e-3), (logits, ref)

  print("KERNEL_OK")
</pallas_src>

<mosaic_0001>
module attributes {stable_mosaic.version = 11 : i64} {
  func.func @_rcnn_kernel(%arg0: memref<16x4xi32, #tpu.memory_space<vmem>>, %arg1: memref<52x32xf32, #tpu.memory_space<vmem>>, %arg2: memref<32x512xf32, #tpu.memory_space<vmem>>, %arg3: memref<128x512xf32, #tpu.memory_space<vmem>>, %arg4: memref<1x512xf32, #tpu.memory_space<vmem>>, %arg5: memref<32x512xf32, #tpu.memory_space<vmem>>, %arg6: memref<128x512xf32, #tpu.memory_space<vmem>>, %arg7: memref<1x512xf32, #tpu.memory_space<vmem>>, %arg8: memref<128x128xf32, #tpu.memory_space<vmem>>, %arg9: memref<32x128xf32, #tpu.memory_space<vmem>>, %arg10: memref<128x128xf32, #tpu.memory_space<vmem>>, %arg11: memref<1x128xf32, #tpu.memory_space<vmem>>, %arg12: memref<128x128xf32, #tpu.memory_space<vmem>>, %arg13: memref<1x128xf32, #tpu.memory_space<vmem>>, %arg14: memref<4x128xf32, #tpu.memory_space<vmem>>, %arg15: memref<16x4x32xf32, #tpu.memory_space<vmem>>, %arg16: memref<16x4x128xf32, #tpu.memory_space<vmem>>, %arg17: memref<16x4x128xf32, #tpu.memory_space<vmem>>) attributes {dimension_semantics = [], scalar_prefetch = 0 : i64, scratch_operands = 3 : i64, tpu.core_type = #tpu.core_type<tc>} {
    %c0 = arith.constant 0 : index
    %c0_0 = arith.constant 0 : index
    %0 = vector.load %arg0[%c0, %c0_0] : memref<16x4xi32, #tpu.memory_space<vmem>>, vector<16x4xi32>
    %1 = tpu.iota {dimensions = array<i32: 2>} : vector<16x4x52xi32>
    %2 = vector.shape_cast %0 : vector<16x4xi32> to vector<16x4x1xi32>
    %3 = vector.broadcast %2 : vector<16x4x1xi32> to vector<16x4x52xi32>
    %4 = arith.cmpi eq, %3, %1 : vector<16x4x52xi32>
    %5 = arith.extui %4 : vector<16x4x52xi1> to vector<16x4x52xi32>
    %6 = arith.sitofp %5 : vector<16x4x52xi32> to vector<16x4x52xf32>
    %7 = vector.shape_cast %6 : vector<16x4x52xf32> to vector<64x52xf32>
    %c0_1 = arith.constant 0 : index
    %c0_2 = arith.constant 0 : index
    %8 = vector.load %arg1[%c0_1, %c0_2] : memref<52x32xf32, #tpu.memory_space<vmem>>, vector<52x32xf32>
    %cst = arith.constant dense<0.000000e+00> : vector<64x32xf32>
    %9 = tpu.matmul %7, %8, %cst {dimension_numbers = #tpu.dot_dimension_numbers<[1], [0], [0], [1], [0, 0, 1, 1], [], []>} : vector<64x52xf32>, vector<52x32xf32>, vector<64x32xf32> -> vector<64x32xf32>
    %10 = vector.shape_cast %9 : vector<64x32xf32> to vector<16x4x32xf32>
    %c0_3 = arith.constant 0 : index
    %c0_4 = arith.constant 0 : index
    %c0_5 = arith.constant 0 : index
    %11 = vector.load %arg15[%c0_3, %c0_4, %c0_5] : memref<16x4x32xf32, #tpu.memory_space<vmem>>, vector<16x4x32xf32>
    tpu.vector_store %arg15[%c0_3, %c0_4, %c0_5], %10 {strides = array<i32>} : memref<16x4x32xf32, #tpu.memory_space<vmem>>, vector<16x4x32xf32>,
    %c0_6 = arith.constant 0 : index
    %c0_7 = arith.constant 0 : index
    %12 = vector.load %arg2[%c0_6, %c0_7] : memref<32x512xf32, #tpu.memory_space<vmem>>, vector<32x512xf32>
    %c0_8 = arith.constant 0 : index
    %c0_9 = arith.constant 0 : index
    %13 = vector.load %arg3[%c0_8, %c0_9] : memref<128x512xf32, #tpu.memory_space<vmem>>, vector<128x512xf32>
    %c0_10 = arith.constant 0 : index
    %c0_11 = arith.constant 0 : index
    %14 = vector.load %arg4[%c0_10, %c0_11] : memref<1x512xf32, #tpu.memory_space<vmem>>, vector<1x512xf32>
    %c0_12 = arith.constant 0 : index
    %c0_13 = arith.constant 0 : index
    %15 = vector.load %arg5[%c0_12, %c0_13] : memref<32x512xf32, #tpu.memory_space<vmem>>, vector<32x512xf32>
    %c0_14 = arith.constant 0 : index
    %c0_15 = arith.constant 0 : index
    %16 = vector.load %arg6[%c0_14, %c0_15] : memref<128x512xf32, #tpu.memory_space<vmem>>, vector<128x512xf32>
    %c0_16 = arith.constant 0 : index
    %c0_17 = arith.constant 0 : index
    %17 = vector.load %arg7[%c0_16, %c0_17] : memref<1x512xf32, #tpu.memory_space<vmem>>, vector<1x512xf32>
    %cst_18 = arith.constant 0.000000e+00 : f32
    %18 = vector.broadcast %cst_18 : f32 to vector<4x128xf32>
    %c0_i32 = arith.constant 0 : i32
    %c16_i32 = arith.constant 16 : i32
    %19 = arith.addi %c0_i32, %c16_i32 : i32
    %c1_i32 = arith.constant 1 : i32
    %20:2 = scf.for %arg18 = %c0_i32 to %19 step %c1_i32 iter_args(%arg19 = %18, %arg20 = %18) -> (vector<4x128xf32>, vector<4x128xf32>)  : i32 {
      %49 = arith.index_cast %arg18 : i32 to index
      %c0_52 = arith.constant 0 : index
      %c0_53 = arith.constant 0 : index
      %50 = vector.load %arg15[%49, %c0_52, %c0_53] : memref<16x4x32xf32, #tpu.memory_space<vmem>>, vector<1x4x32xf32>
      %51 = vector.shape_cast %50 : vector<1x4x32xf32> to vector<4x32xf32>
      %cst_54 = arith.constant dense<0.000000e+00> : vector<4x512xf32>
      %52 = tpu.matmul %51, %12, %cst_54 {dimension_numbers = #tpu.dot_dimension_numbers<[1], [0], [0], [1], [0, 0, 1, 1], [], []>} : vector<4x32xf32>, vector<32x512xf32>, vector<4x512xf32> -> vector<4x512xf32>
      %cst_55 = arith.constant dense<0.000000e+00> : vector<4x512xf32>
      %53 = tpu.matmul %arg19, %13, %cst_55 {dimension_numbers = #tpu.dot_dimension_numbers<[1], [0], [0], [1], [0, 0, 1, 1], [], []>} : vector<4x128xf32>, vector<128x512xf32>, vector<4x512xf32> -> vector<4x512xf32>
      %54 = arith.addf %52, %53 : vector<4x512xf32>
      %55 = vector.broadcast %14 : vector<1x512xf32> to vector<4x512xf32>
      %56 = arith.addf %54, %55 : vector<4x512xf32>
      %57 = vector.extract_strided_slice %56 {offsets = [0, 0], sizes = [4, 128], strides = [1, 1]} : vector<4x512xf32> to vector<4x128xf32>
      %cst_56 = arith.constant 0.000000e+00 : f32
      %58 = vector.broadcast %cst_56 : f32 to vector<4x128xf32>
      %59 = arith.subf %58, %57 : vector<4x128xf32>
      %60 = math.exp %59 : vector<4x128xf32>
      %cst_57 = arith.constant 1.000000e+00 : f32
      %61 = vector.broadcast %cst_57 : f32 to vector<4x128xf32>
      %62 = arith.addf %61, %60 : vector<4x128xf32>
      %cst_58 = arith.constant 1.000000e+00 : f32
      %63 = vector.broadcast %cst_58 : f32 to vector<4x128xf32>
      %64 = arith.divf %63, %62 : vector<4x128xf32>
      %65 = vector.extract_strided_slice %56 {offsets = [0, 128], sizes = [4, 128], strides = [1, 1]} : vector<4x512xf32> to vector<4x128xf32>
      %cst_59 = arith.constant 0.000000e+00 : f32
      %66 = vector.broadcast %cst_59 : f32 to vector<4x128xf32>
      %67 = arith.subf %66, %65 : vector<4x128xf32>
      %68 = math.exp %67 : vector<4x128xf32>
      %cst_60 = arith.constant 1.000000e+00 : f32
      %69 = vector.broadcast %cst_60 : f32 to vector<4x128xf32>
      %70 = arith.addf %69, %68 : vector<4x128xf32>
      %cst_61 = arith.constant 1.000000e+00 : f32
      %71 = vector.broadcast %cst_61 : f32 to vector<4x128xf32>
      %72 = arith.divf %71, %70 : vector<4x128xf32>
      %73 = vector.extract_strided_slice %56 {offsets = [0, 256], sizes = [4, 128], strides = [1, 1]} : vector<4x512xf32> to vector<4x128xf32>
      %74 = math.tanh %73 : vector<4x128xf32>
      %75 = vector.extract_strided_slice %56 {offsets = [0, 384], sizes = [4, 128], strides = [1, 1]} : vector<4x512xf32> to vector<4x128xf32>
      %cst_62 = arith.constant 0.000000e+00 : f32
      %76 = vector.broadcast %cst_62 : f32 to vector<4x128xf32>
      %77 = arith.subf %76, %75 : vector<4x128xf32>
      %78 = math.exp %77 : vector<4x128xf32>
      %cst_63 = arith.constant 1.000000e+00 : f32
      %79 = vector.broadcast %cst_63 : f32 to vector<4x128xf32>
      %80 = arith.addf %79, %78 : vector<4x128xf32>
      %cst_64 = arith.constant 1.000000e+00 : f32
      %81 = vector.broadcast %cst_64 : f32 to vector<4x128xf32>
      %82 = arith.divf %81, %80 : vector<4x128xf32>
      %83 = arith.mulf %72, %arg20 : vector<4x128xf32>
      %84 = arith.mulf %64, %74 : vector<4x128xf32>
      %85 = arith.addf %83, %84 : vector<4x128xf32>
      %86 = math.tanh %85 : vector<4x128xf32>
      %87 = arith.mulf %82, %86 : vector<4x128xf32>
      %88 = arith.index_cast %arg18 : i32 to index
      %c0_65 = arith.constant 0 : index
      %c0_66 = arith.constant 0 : index
      %89 = vector.load %arg16[%88, %c0_65, %c0_66] : memref<16x4x128xf32, #tpu.memory_space<vmem>>, vector<1x4x128xf32>
      %90 = vector.shape_cast %89 : vector<1x4x128xf32> to vector<4x128xf32>
      %91 = vector.shape_cast %87 : vector<4x128xf32> to vector<1x4x128xf32>
      tpu.vector_store %arg16[%88, %c0_65, %c0_66], %91 {strides = array<i32>} : memref<16x4x128xf32, #tpu.memory_space<vmem>>, vector<1x4x128xf32>,
      scf.yield %87, %85 : vector<4x128xf32>, vector<4x128xf32>
    }
    %c16_i32_19 = arith.constant 16 : i32
    %c0_i32_20 = arith.constant 0 : i32
    %c16_i32_21 = arith.constant 16 : i32
    %21 = arith.addi %c0_i32_20, %c16_i32_21 : i32
    %c1_i32_22 = arith.constant 1 : i32
    %22:2 = scf.for %arg18 = %c0_i32_20 to %21 step %c1_i32_22 iter_args(%arg19 = %18, %arg20 = %18) -> (vector<4x128xf32>, vector<4x128xf32>)  : i32 {
      %c15_i32 = arith.constant 15 : i32
      %49 = arith.subi %c15_i32, %arg18 : i32
      %50 = arith.index_cast %49 : i32 to index
      %c0_52 = arith.constant 0 : index
      %c0_53 = arith.constant 0 : index
      %51 = vector.load %arg15[%50, %c0_52, %c0_53] : memref<16x4x32xf32, #tpu.memory_space<vmem>>, vector<1x4x32xf32>
      %52 = vector.shape_cast %51 : vector<1x4x32xf32> to vector<4x32xf32>
      %cst_54 = arith.constant dense<0.000000e+00> : vector<4x512xf32>
      %53 = tpu.matmul %52, %15, %cst_54 {dimension_numbers = #tpu.dot_dimension_numbers<[1], [0], [0], [1], [0, 0, 1, 1], [], []>} : vector<4x32xf32>, vector<32x512xf32>, vector<4x512xf32> -> vector<4x512xf32>
      %cst_55 = arith.constant dense<0.000000e+00> : vector<4x512xf32>
      %54 = tpu.matmul %arg19, %16, %cst_55 {dimension_numbers = #tpu.dot_dimension_numbers<[1], [0], [0], [1], [0, 0, 1, 1], [], []>} : vector<4x128xf32>, vector<128x512xf32>, vector<4x512xf32> -> vector<4x512xf32>
      %55 = arith.addf %53, %54 : vector<4x512xf32>
      %56 = vector.broadcast %17 : vector<1x512xf32> to vector<4x512xf32>
      %57 = arith.addf %55, %56 : vector<4x512xf32>
      %58 = vector.extract_strided_slice %57 {offsets = [0, 0], sizes = [4, 128], strides = [1, 1]} : vector<4x512xf32> to vector<4x128xf32>
      %cst_56 = arith.constant 0.000000e+00 : f32
      %59 = vector.broadcast %cst_56 : f32 to vector<4x128xf32>
      %60 = arith.subf %59, %58 : vector<4x128xf32>
      %61 = math.exp %60 : vector<4x128xf32>
      %cst_57 = arith.constant 1.000000e+00 : f32
      %62 = vector.broadcast %cst_57 : f32 to vector<4x128xf32>
      %63 = arith.addf %62, %61 : vector<4x128xf32>
      %cst_58 = arith.constant 1.000000e+00 : f32
      %64 = vector.broadcast %cst_58 : f32 to vector<4x128xf32>
      %65 = arith.divf %64, %63 : vector<4x128xf32>
      %66 = vector.extract_strided_slice %57 {offsets = [0, 128], sizes = [4, 128], strides = [1, 1]} : vector<4x512xf32> to vector<4x128xf32>
      %cst_59 = arith.constant 0.000000e+00 : f32
      %67 = vector.broadcast %cst_59 : f32 to vector<4x128xf32>
      %68 = arith.subf %67, %66 : vector<4x128xf32>
      %69 = math.exp %68 : vector<4x128xf32>
      %cst_60 = arith.constant 1.000000e+00 : f32
      %70 = vector.broadcast %cst_60 : f32 to vector<4x128xf32>
      %71 = arith.addf %70, %69 : vector<4x128xf32>
      %cst_61 = arith.constant 1.000000e+00 : f32
      %72 = vector.broadcast %cst_61 : f32 to vector<4x128xf32>
      %73 = arith.divf %72, %71 : vector<4x128xf32>
      %74 = vector.extract_strided_slice %57 {offsets = [0, 256], sizes = [4, 128], strides = [1, 1]} : vector<4x512xf32> to vector<4x128xf32>
      %75 = math.tanh %74 : vector<4x128xf32>
      %76 = vector.extract_strided_slice %57 {offsets = [0, 384], sizes = [4, 128], strides = [1, 1]} : vector<4x512xf32> to vector<4x128xf32>
      %cst_62 = arith.constant 0.000000e+00 : f32
      %77 = vector.broadcast %cst_62 : f32 to vector<4x128xf32>
      %78 = arith.subf %77, %76 : vector<4x128xf32>
      %79 = math.exp %78 : vector<4x128xf32>
      %cst_63 = arith.constant 1.000000e+00 : f32
      %80 = vector.broadcast %cst_63 : f32 to vector<4x128xf32>
      %81 = arith.addf %80, %79 : vector<4x128xf32>
      %cst_64 = arith.constant 1.000000e+00 : f32
      %82 = vector.broadcast %cst_64 : f32 to vector<4x128xf32>
      %83 = arith.divf %82, %81 : vector<4x128xf32>
      %84 = arith.mulf %73, %arg20 : vector<4x128xf32>
      %85 = arith.mulf %65, %75 : vector<4x128xf32>
      %86 = arith.addf %84, %85 : vector<4x128xf32>
      %87 = math.tanh %86 : vector<4x128xf32>
      %88 = arith.mulf %83, %87 : vector<4x128xf32>
      %89 = arith.index_cast %49 : i32 to index
      %c0_65 = arith.constant 0 : index
      %c0_66 = arith.constant 0 : index
      %90 = vector.load %arg17[%89, %c0_65, %c0_66] : memref<16x4x128xf32, #tpu.memory_space<vmem>>, vector<1x4x128xf32>
      %91 = vector.shape_cast %90 : vector<1x4x128xf32> to vector<4x128xf32>
      %92 = vector.shape_cast %88 : vector<4x128xf32> to vector<1x4x128xf32>
      tpu.vector_store %arg17[%89, %c0_65, %c0_66], %92 {strides = array<i32>} : memref<16x4x128xf32, #tpu.memory_space<vmem>>, vector<1x4x128xf32>,
      scf.yield %88, %86 : vector<4x128xf32>, vector<4x128xf32>
    }
    %c16_i32_23 = arith.constant 16 : i32
    %c0_24 = arith.constant 0 : index
    %c0_25 = arith.constant 0 : index
    %c0_26 = arith.constant 0 : index
    %23 = vector.load %arg16[%c0_24, %c0_25, %c0_26] : memref<16x4x128xf32, #tpu.memory_space<vmem>>, vector<16x4x128xf32>
    %24 = vector.shape_cast %23 : vector<16x4x128xf32> to vector<64x128xf32>
    %c0_27 = arith.constant 0 : index
    %c0_28 = arith.constant 0 : index
    %c0_29 = arith.constant 0 : index
    %25 = vector.load %arg17[%c0_27, %c0_28, %c0_29] : memref<16x4x128xf32, #tpu.memory_space<vmem>>, vector<16x4x128xf32>
    %26 = vector.shape_cast %25 : vector<16x4x128xf32> to vector<64x128xf32>
    %c0_30 = arith.constant 0 : index
    %c0_31 = arith.constant 0 : index
    %c0_32 = arith.constant 0 : index
    %27 = vector.load %arg15[%c0_30, %c0_31, %c0_32] : memref<16x4x32xf32, #tpu.memory_space<vmem>>, vector<16x4x32xf32>
    %28 = vector.shape_cast %27 : vector<16x4x32xf32> to vector<64x32xf32>
    %c0_33 = arith.constant 0 : index
    %c0_34 = arith.constant 0 : index
    %29 = vector.load %arg8[%c0_33, %c0_34] : memref<128x128xf32, #tpu.memory_space<vmem>>, vector<128x128xf32>
    %cst_35 = arith.constant dense<0.000000e+00> : vector<64x128xf32>
    %30 = tpu.matmul %24, %29, %cst_35 {dimension_numbers = #tpu.dot_dimension_numbers<[1], [0], [0], [1], [0, 0, 1, 1], [], []>} : vector<64x128xf32>, vector<128x128xf32>, vector<64x128xf32> -> vector<64x128xf32>
    %c0_36 = arith.constant 0 : index
    %c0_37 = arith.constant 0 : index
    %31 = vector.load %arg9[%c0_36, %c0_37] : memref<32x128xf32, #tpu.memory_space<vmem>>, vector<32x128xf32>
    %cst_38 = arith.constant dense<0.000000e+00> : vector<64x128xf32>
    %32 = tpu.matmul %28, %31, %cst_38 {dimension_numbers = #tpu.dot_dimension_numbers<[1], [0], [0], [1], [0, 0, 1, 1], [], []>} : vector<64x32xf32>, vector<32x128xf32>, vector<64x128xf32> -> vector<64x128xf32>
    %33 = arith.addf %30, %32 : vector<64x128xf32>
    %c0_39 = arith.constant 0 : index
    %c0_40 = arith.constant 0 : index
    %34 = vector.load %arg10[%c0_39, %c0_40] : memref<128x128xf32, #tpu.memory_space<vmem>>, vector<128x128xf32>
    %cst_41 = arith.constant dense<0.000000e+00> : vector<64x128xf32>
    %35 = tpu.matmul %26, %34, %cst_41 {dimension_numbers = #tpu.dot_dimension_numbers<[1], [0], [0], [1], [0, 0, 1, 1], [], []>} : vector<64x128xf32>, vector<128x128xf32>, vector<64x128xf32> -> vector<64x128xf32>
    %36 = arith.addf %33, %35 : vector<64x128xf32>
    %c0_42 = arith.constant 0 : index
    %c0_43 = arith.constant 0 : index
    %37 = vector.load %arg11[%c0_42, %c0_43] : memref<1x128xf32, #tpu.memory_space<vmem>>, vector<1x128xf32>
    %38 = vector.broadcast %37 : vector<1x128xf32> to vector<64x128xf32>
    %39 = arith.addf %36, %38 : vector<64x128xf32>
    %40 = math.tanh %39 : vector<64x128xf32>
    %41 = vector.shape_cast %40 : vector<64x128xf32> to vector<16x4x128xf32>
    %cst_44 = arith.constant dense<0xFF800000> : vector<4x128xf32>
    %42 = vector.multi_reduction <maximumf>, %41, %cst_44 [0] : vector<16x4x128xf32> to vector<4x128xf32>
    %c0_45 = arith.constant 0 : index
    %c0_46 = arith.constant 0 : index
    %43 = vector.load %arg12[%c0_45, %c0_46] : memref<128x128xf32, #tpu.memory_space<vmem>>, vector<128x128xf32>
    %cst_47 = arith.constant dense<0.000000e+00> : vector<4x128xf32>
    %44 = tpu.matmul %42, %43, %cst_47 {dimension_numbers = #tpu.dot_dimension_numbers<[1], [0], [0], [1], [0, 0, 1, 1], [], []>} : vector<4x128xf32>, vector<128x128xf32>, vector<4x128xf32> -> vector<4x128xf32>
    %c0_48 = arith.constant 0 : index
    %c0_49 = arith.constant 0 : index
    %45 = vector.load %arg13[%c0_48, %c0_49] : memref<1x128xf32, #tpu.memory_space<vmem>>, vector<1x128xf32>
    %46 = vector.broadcast %45 : vector<1x128xf32> to vector<4x128xf32>
    %47 = arith.addf %44, %46 : vector<4x128xf32>
    %c0_50 = arith.constant 0 : index
    %c0_51 = arith.constant 0 : index
    %48 = vector.load %arg14[%c0_50, %c0_51] : memref<4x128xf32, #tpu.memory_space<vmem>>, vector<4x128xf32>
    tpu.vector_store %arg14[%c0_50, %c0_51], %47 {strides = array<i32>} : memref<4x128xf32, #tpu.memory_space<vmem>>, vector<4x128xf32>,
    return
  }
}

</mosaic_0001>

<llo_original>
// kernel: rcnn_forward.1
$region0: #{rcnn_forward.1}
  #allocation0 [shape = 'u32[]', space=smem, size = 0x4, offset = 0x4, fixed_abs, tag = 'smem constant byte address 0x4 - core index']
  #allocation1 [shape = 'u32[72,128]{1,0:T(1,128)}', space=vmem, size = 0x9000, scoped, tag = 'internal scratch']
  #allocation2 [shape = 'f32[16,4,32]{2,1,0:T(4,128)}', space=vmem, size = 0x8000, scoped, tag = 'scratch operand']
  #allocation3 [shape = 'f32[16,4,128]{2,1,0:T(4,128)}', space=vmem, size = 0x8000, scoped, tag = 'scratch operand']
  #allocation4 [shape = 'f32[16,4,128]{2,1,0:T(4,128)}', space=vmem, size = 0x8000, scoped, tag = 'scratch operand']
  %s0 = inlined_call_operand.vmem [shape: s32[16,4], index: 0, kind: input, shape index: {}]
  %s1 = inlined_call_operand.vmem [shape: f32[52,32], index: 1, kind: input, shape index: {}]
  %s2 = inlined_call_operand.hbm [shape: f32[32,512], index: 2, kind: input, shape index: {}]
  %s3 = inlined_call_operand.hbm [shape: f32[128,512], index: 3, kind: input, shape index: {}]
  %s4 = inlined_call_operand.vmem [shape: f32[1,512], index: 4, kind: input, shape index: {}]
  %s5 = inlined_call_operand.hbm [shape: f32[32,512], index: 5, kind: input, shape index: {}]
  %s6 = inlined_call_operand.hbm [shape: f32[128,512], index: 6, kind: input, shape index: {}]
  %s7 = inlined_call_operand.vmem [shape: f32[1,512], index: 7, kind: input, shape index: {}]
  %s8 = inlined_call_operand.hbm [shape: f32[128,128], index: 8, kind: input, shape index: {}]
  %s9 = inlined_call_operand.vmem [shape: f32[32,128], index: 9, kind: input, shape index: {}]
  %s10 = inlined_call_operand.hbm [shape: f32[128,128], index: 10, kind: input, shape index: {}]
  %s11 = inlined_call_operand.vmem [shape: f32[1,128], index: 11, kind: input, shape index: {}]
  %s12 = inlined_call_operand.hbm [shape: f32[128,128], index: 12, kind: input, shape index: {}]
  %s13 = inlined_call_operand.vmem [shape: f32[1,128], index: 13, kind: input, shape index: {}]
  %s14 = inlined_call_operand.hbm [shape: f32[4,128], index: 14, kind: output, shape index: {}]
  %s15 = sld [smem:[#allocation0]]
  $region108: #{rcnn_forward.1} parent=0
    _
  %s17 = ssub.s32 1, %s15
  %s18 = scalar_select 0, %s17, %s15
  $region1: #{rcnn_forward.1} parent=0
    #allocation5 [shape = 'u8[65536]{0}', space=vmem, size = 0x10000, scoped, tag = 'input window, operand 2, single buffered']
    #allocation6 [shape = 's32[1]{0}', space=sflag, size = 0x4, scoped, tag = 'scoped memory for rcnn_forward.1']
    #allocation7 [shape = 's32[1]{0}', space=sflag, size = 0x4, scoped, tag = 'scoped memory for rcnn_forward.1']
    #allocation8 [shape = 'u8[262144]{0}', space=vmem, size = 0x40000, scoped, tag = 'input window, operand 3, single buffered']
    #allocation9 [shape = 's32[1]{0}', space=sflag, size = 0x4, scoped, tag = 'scoped memory for rcnn_forward.1']
    #allocation10 [shape = 'u8[65536]{0}', space=vmem, size = 0x10000, scoped, tag = 'input window, operand 5, single buffered']
    #allocation11 [shape = 'u8[262144]{0}', space=vmem, size = 0x40000, scoped, tag = 'input window, operand 6, single buffered']
    #allocation12 [shape = 's32[1]{0}', space=sflag, size = 0x4, scoped, tag = 'scoped memory for rcnn_forward.1']
    #allocation13 [shape = 'u8[65536]{0}', space=vmem, size = 0x10000, scoped, tag = 'input window, operand 8, single buffered']
    #allocation14 [shape = 'u8[65536]{0}', space=vmem, size = 0x10000, scoped, tag = 'input window, operand 10, single buffered']
    #allocation15 [shape = 's32[1]{0}', space=sflag, size = 0x4, scoped, tag = 'scoped memory for rcnn_forward.1']
    #allocation16 [shape = 'u8[65536]{0}', space=vmem, size = 0x10000, scoped, tag = 'input window, operand 12, single buffered']
    #allocation17 [shape = 'u8[2048]{0}', space=vmem, size = 0x800, scoped, tag = 'output window, operand 0, single buffered']
    %19 = vsyncpa [#allocation6], 0
    %20 = vsyncpa [#allocation9], 0
    %21 = vsyncpa [#allocation12], 0
    %22 = vsyncpa [#allocation15], 0
    %23 = vsyncpa [#allocation7], 0
    // Predicated region
    $region2: #{rcnn_forward.1} parent=1 // pred_check
      _
    $region3: #{rcnn_forward.1} parent=1 // pred_check_branch
      %25 = sbr.rel (0) target = $region5
    $region4: #{rcnn_forward.1} parent=1 // pred_region
      _
    $region5: #{rcnn_forward.1} parent=1 // pred_fallthru
      _
    // Predicated region
    $region6: #{rcnn_forward.1} parent=1 // pred_check
      _
    $region7: #{rcnn_forward.1} parent=1 // pred_check_branch
      %27 = sbr.rel (0) target = $region9
    $region8: #{rcnn_forward.1} parent=1 // pred_region
      _
    $region9: #{rcnn_forward.1} parent=1 // pred_fallthru
      _
    // Predicated region
    $region10: #{rcnn_forward.1} parent=1 // pred_check
      _
    $region11: #{rcnn_forward.1} parent=1 // pred_check_branch
      %29 = sbr.rel (0) target = $region13
    $region12: #{rcnn_forward.1} parent=1 // pred_region
      %31 = vsyncadd [#allocation6], 0
      %s32 = sshll.u32 %s2, 4
      %s33 = int_to_ptr.hbm [resolvable:$true] %s32
      %s34 = sshll.u32 [#allocation5], 4
      %s35 = int_to_ptr.vmem [resolvable:$true] %s34
      %40 = dma.hbm_to_vmem [thread:$0]  %s33, 2048, %s35, [#allocation6], 512, 512, 32
    $region13: #{rcnn_forward.1} parent=1 // pred_fallthru
      _
    // Predicated region
    $region14: #{rcnn_forward.1} parent=1 // pred_check
      _
    $region15: #{rcnn_forward.1} parent=1 // pred_check_branch
      %42 = sbr.rel (0) target = $region17
    $region16: #{rcnn_forward.1} parent=1 // pred_region
      %44 = vsyncadd [#allocation9], 0
      %s45 = sshll.u32 %s3, 4
      %s46 = int_to_ptr.hbm [resolvable:$true] %s45
      %s47 = sshll.u32 [#allocation8], 4
      %s48 = int_to_ptr.vmem [resolvable:$true] %s47
      %53 = dma.hbm_to_vmem [thread:$0]  %s46, 8192, %s48, [#allocation9], 512, 512, 32
    $region17: #{rcnn_forward.1} parent=1 // pred_fallthru
      _
    // Predicated region
    $region18: #{rcnn_forward.1} parent=1 // pred_check
      _
    $region19: #{rcnn_forward.1} parent=1 // pred_check_branch
      %55 = sbr.rel (0) target = $region21
    $region20: #{rcnn_forward.1} parent=1 // pred_region
      _
    $region21: #{rcnn_forward.1} parent=1 // pred_fallthru
      _
    // Predicated region
    $region22: #{rcnn_forward.1} parent=1 // pred_check
      _
    $region23: #{rcnn_forward.1} parent=1 // pred_check_branch
      %57 = sbr.rel (0) target = $region25
    $region24: #{rcnn_forward.1} parent=1 // pred_region
      %59 = vsyncadd [#allocation9], 0
      %s60 = sshll.u32 %s5, 4
      %s61 = int_to_ptr.hbm [resolvable:$true] %s60
      %s62 = sshll.u32 [#allocation10], 4
      %s63 = int_to_ptr.vmem [resolvable:$true] %s62
      %68 = dma.hbm_to_vmem [thread:$0]  %s61, 2048, %s63, [#allocation9], 512, 512, 32
    $region25: #{rcnn_forward.1} parent=1 // pred_fallthru
      _
    // Predicated region
    $region26: #{rcnn_forward.1} parent=1 // pred_check
      _
    $region27: #{rcnn_forward.1} parent=1 // pred_check_branch
      %70 = sbr.rel (0) target = $region29
    $region28: #{rcnn_forward.1} parent=1 // pred_region
      %72 = vsyncadd [#allocation12], 0
      %s73 = sshll.u32 %s6, 4
      %s74 = int_to_ptr.hbm [resolvable:$true] %s73
      %s75 = sshll.u32 [#allocation11], 4
      %s76 = int_to_ptr.vmem [resolvable:$true] %s75
      %81 = dma.hbm_to_vmem [thread:$0]  %s74, 8192, %s76, [#allocation12], 512, 512, 32
    $region29: #{rcnn_forward.1} parent=1 // pred_fallthru
      _
    // Predicated region
    $region30: #{rcnn_forward.1} parent=1 // pred_check
      _
    $region31: #{rcnn_forward.1} parent=1 // pred_check_branch
      %83 = sbr.rel (0) target = $region33
    $region32: #{rcnn_forward.1} parent=1 // pred_region
      _
    $region33: #{rcnn_forward.1} parent=1 // pred_fallthru
      _
    // Predicated region
    $region34: #{rcnn_forward.1} parent=1 // pred_check
      _
    $region35: #{rcnn_forward.1} parent=1 // pred_check_branch
      %85 = sbr.rel (0) target = $region37
    $region36: #{rcnn_forward.1} parent=1 // pred_region
      %87 = vsyncadd [#allocation12], 0
      %s88 = sshll.u32 %s8, 4
      %s89 = int_to_ptr.hbm [resolvable:$true] %s88
      %s90 = sshll.u32 [#allocation13], 4
      %s91 = int_to_ptr.vmem [resolvable:$true] %s90
      %96 = dma.hbm_to_vmem [thread:$0]  %s89, 2048, %s91, [#allocation12], 128, 128, 8
    $region37: #{rcnn_forward.1} parent=1 // pred_fallthru
      _
    // Predicated region
    $region38: #{rcnn_forward.1} parent=1 // pred_check
      _
    $region39: #{rcnn_forward.1} parent=1 // pred_check_branch
      %98 = sbr.rel (0) target = $region41
    $region40: #{rcnn_forward.1} parent=1 // pred_region
      _
    $region41: #{rcnn_forward.1} parent=1 // pred_fallthru
      _
    // Predicated region
    $region42: #{rcnn_forward.1} parent=1 // pred_check
      _
    $region43: #{rcnn_forward.1} parent=1 // pred_check_branch
      %100 = sbr.rel (0) target = $region45
    $region44: #{rcnn_forward.1} parent=1 // pred_region
      %102 = vsyncadd [#allocation15], 0
      %s103 = sshll.u32 %s10, 4
      %s104 = int_to_ptr.hbm [resolvable:$true] %s103
      %s105 = sshll.u32 [#allocation14], 4
      %s106 = int_to_ptr.vmem [resolvable:$true] %s105
      %111 = dma.hbm_to_vmem [thread:$0]  %s104, 2048, %s106, [#allocation15], 128, 128, 8
    $region45: #{rcnn_forward.1} parent=1 // pred_fallthru
      _
    // Predicated region
    $region46: #{rcnn_forward.1} parent=1 // pred_check
      _
    $region47: #{rcnn_forward.1} parent=1 // pred_check_branch
      %113 = sbr.rel (0) target = $region49
    $region48: #{rcnn_forward.1} parent=1 // pred_region
      _
    $region49: #{rcnn_forward.1} parent=1 // pred_fallthru
      _
    // Predicated region
    $region50: #{rcnn_forward.1} parent=1 // pred_check
      _
    $region51: #{rcnn_forward.1} parent=1 // pred_check_branch
      %115 = sbr.rel (0) target = $region53
    $region52: #{rcnn_forward.1} parent=1 // pred_region
      %117 = vsyncadd [#allocation15], 0
      %s118 = sshll.u32 %s12, 4
      %s119 = int_to_ptr.hbm [resolvable:$true] %s118
      %s120 = sshll.u32 [#allocation16], 4
      %s121 = int_to_ptr.vmem [resolvable:$true] %s120
      %126 = dma.hbm_to_vmem [thread:$0]  %s119, 2048, %s121, [#allocation15], 128, 128, 8
    $region53: #{rcnn_forward.1} parent=1 // pred_fallthru
      _
    // Predicated region
    $region54: #{rcnn_forward.1} parent=1 // pred_check
      _
    $region55: #{rcnn_forward.1} parent=1 // pred_check_branch
      %128 = sbr.rel (0) target = $region57
    $region56: #{rcnn_forward.1} parent=1 // pred_region
      _
    $region57: #{rcnn_forward.1} parent=1 // pred_fallthru
      _
    // Predicated region
    $region58: #{rcnn_forward.1} parent=1 // pred_check
      _
    $region59: #{rcnn_forward.1} parent=1 // pred_check_branch
      %130 = sbr.rel (0) target = $region61
    $region60: #{rcnn_forward.1} parent=1 // pred_region
      %132 = dma.done [#allocation6], 2048
    $region61: #{rcnn_forward.1} parent=1 // pred_fallthru
      _
    // Predicated region
    $region62: #{rcnn_forward.1} parent=1 // pred_check
      _
    $region63: #{rcnn_forward.1} parent=1 // pred_check_branch
      %134 = sbr.rel (0) target = $region65
    $region64: #{rcnn_forward.1} parent=1 // pred_region
      %136 = dma.done [#allocation9], 8192
    $region65: #{rcnn_forward.1} parent=1 // pred_fallthru
      _
    // Predicated region
    $region66: #{rcnn_forward.1} parent=1 // pred_check
      _
    $region67: #{rcnn_forward.1} parent=1 // pred_check_branch
      %138 = sbr.rel (0) target = $region69
    $region68: #{rcnn_forward.1} parent=1 // pred_region
      %140 = dma.done [#allocation9], 2048
    $region69: #{rcnn_forward.1} parent=1 // pred_fallthru
      _
    // Predicated region
    $region70: #{rcnn_forward.1} parent=1 // pred_check
      _
    $region71: #{rcnn_forward.1} parent=1 // pred_check_branch
      %142 = sbr.rel (0) target = $region73
    $region72: #{rcnn_forward.1} parent=1 // pred_region
      %144 = dma.done [#allocation12], 8192
    $region73: #{rcnn_forward.1} parent=1 // pred_fallthru
      _
    // Predicated region
    $region74: #{rcnn_forward.1} parent=1 // pred_check
      _
    $region75: #{rcnn_forward.1} parent=1 // pred_check_branch
      %146 = sbr.rel (0) target = $region77
    $region76: #{rcnn_forward.1} parent=1 // pred_region
      %148 = dma.done [#allocation12], 2048
    $region77: #{rcnn_forward.1} parent=1 // pred_fallthru
      _
    // Predicated region
    $region78: #{rcnn_forward.1} parent=1 // pred_check
      _
    $region79: #{rcnn_forward.1} parent=1 // pred_check_branch
      %150 = sbr.rel (0) target = $region81
    $region80: #{rcnn_forward.1} parent=1 // pred_region
      %152 = dma.done [#allocation15], 2048
    $region81: #{rcnn_forward.1} parent=1 // pred_fallthru
      _
    // Predicated region
    $region82: #{rcnn_forward.1} parent=1 // pred_check
      _
    $region83: #{rcnn_forward.1} parent=1 // pred_check_branch
      %154 = sbr.rel (0) target = $region85
    $region84: #{rcnn_forward.1} parent=1 // pred_region
      %156 = dma.done [#allocation15], 2048
    $region85: #{rcnn_forward.1} parent=1 // pred_fallthru
      _
    %v157 = vld [vmem:[%s0] sm:$0xff]
    %v158 = vld [vmem:[%s0 + $0x8] sm:$0xff]
    %v159 = vlaneseq
    %v160 = vand.u32 %v159, 127
    %v161 = vperm.slane %v157, 0
    %v162 = vlaneseq
    %v163 = vshrl.u32 %v162, 7
    %165 = vset.pattern.permute.xlu0 %v163
    %166 = vperm.xlu0 %165, %v161
    %v167 = vpop.permute.xlu0 %166
    %v168 = vperm.slane %v157, 1
    %v169 = vlaneseq
    %v170 = vshrl.u32 %v169, 7
    %172 = vset.pattern.permute.xlu0 %v170
    %173 = vperm.xlu0 %172, %v168
    %v174 = vpop.permute.xlu0 %173
    %v175 = vperm.slane %v157, 2
    %v176 = vlaneseq
    %v177 = vshrl.u32 %v176, 7
    %179 = vset.pattern.permute.xlu0 %v177
    %180 = vperm.xlu0 %179, %v175
    %v181 = vpop.permute.xlu0 %180
    %v182 = vperm.slane %v157, 3
    %v183 = vlaneseq
    %v184 = vshrl.u32 %v183, 7
    %186 = vset.pattern.permute.xlu0 %v184
    %187 = vperm.xlu0 %186, %v182
    %v188 = vpop.permute.xlu0 %187
    %v189 = vperm.slane %v157, 4
    %v190 = vlaneseq
    %v191 = vshrl.u32 %v190, 7
    %193 = vset.pattern.permute.xlu0 %v191
    %194 = vperm.xlu0 %193, %v189
    %v195 = vpop.permute.xlu0 %194
    %v196 = vperm.slane %v157, 5
    %v197 = vlaneseq
    %v198 = vshrl.u32 %v197, 7
    %200 = vset.pattern.permute.xlu0 %v198
    %201 = vperm.xlu0 %200, %v196
    %v202 = vpop.permute.xlu0 %201
    %v203 = vperm.slane %v157, 6
    %v204 = vlaneseq
    %v205 = vshrl.u32 %v204, 7
    %207 = vset.pattern.permute.xlu0 %v205
    %208 = vperm.xlu0 %207, %v203
    %v209 = vpop.permute.xlu0 %208
    %v210 = vperm.slane %v157, 7
    %v211 = vlaneseq
    %v212 = vshrl.u32 %v211, 7
    %214 = vset.pattern.permute.xlu0 %v212
    %215 = vperm.xlu0 %214, %v210
    %v216 = vpop.permute.xlu0 %215
    %v217 = vperm.slane %v158, 0
    %v218 = vlaneseq
    %v219 = vshrl.u32 %v218, 7
    %221 = vset.pattern.permute.xlu0 %v219
    %222 = vperm.xlu0 %221, %v217
    %v223 = vpop.permute.xlu0 %222
    %v224 = vperm.slane %v158, 1
    %v225 = vlaneseq
    %v226 = vshrl.u32 %v225, 7
    %228 = vset.pattern.permute.xlu0 %v226
    %229 = vperm.xlu0 %228, %v224
    %v230 = vpop.permute.xlu0 %229
    %v231 = vperm.slane %v158, 2
    %v232 = vlaneseq
    %v233 = vshrl.u32 %v232, 7
    %235 = vset.pattern.permute.xlu0 %v233
    %236 = vperm.xlu0 %235, %v231
    %v237 = vpop.permute.xlu0 %236
    %v238 = vperm.slane %v158, 3
    %v239 = vlaneseq
    %v240 = vshrl.u32 %v239, 7
    %242 = vset.pattern.permute.xlu0 %v240
    %243 = vperm.xlu0 %242, %v238
    %v244 = vpop.permute.xlu0 %243
    %v245 = vperm.slane %v158, 4
    %v246 = vlaneseq
    %v247 = vshrl.u32 %v246, 7
    %249 = vset.pattern.permute.xlu0 %v247
    %250 = vperm.xlu0 %249, %v245
    %v251 = vpop.permute.xlu0 %250
    %v252 = vperm.slane %v158, 5
    %v253 = vlaneseq
    %v254 = vshrl.u32 %v253, 7
    %256 = vset.pattern.permute.xlu0 %v254
    %257 = vperm.xlu0 %256, %v252
    %v258 = vpop.permute.xlu0 %257
    %v259 = vperm.slane %v158, 6
    %v260 = vlaneseq
    %v261 = vshrl.u32 %v260, 7
    %263 = vset.pattern.permute.xlu0 %v261
    %264 = vperm.xlu0 %263, %v259
    %v265 = vpop.permute.xlu0 %264
    %v266 = vperm.slane %v158, 7
    %v267 = vlaneseq
    %v268 = vshrl.u32 %v267, 7
    %270 = vset.pattern.permute.xlu0 %v268
    %271 = vperm.xlu0 %270, %v266
    %v272 = vpop.permute.xlu0 %271
    %vm273 = vcmp.eq.s32.totalorder %v167, %v160
    %vm274 = vcmp.eq.s32.totalorder %v174, %v160
    %vm275 = vcmp.eq.s32.totalorder %v181, %v160
    %vm276 = vcmp.eq.s32.totalorder %v188, %v160
    %vm277 = vcmp.eq.s32.totalorder %v195, %v160
    %vm278 = vcmp.eq.s32.totalorder %v202, %v160
    %vm279 = vcmp.eq.s32.totalorder %v209, %v160
    %vm280 = vcmp.eq.s32.totalorder %v216, %v160
    %vm281 = vcmp.eq.s32.totalorder %v223, %v160
    %vm282 = vcmp.eq.s32.totalorder %v230, %v160
    %vm283 = vcmp.eq.s32.totalorder %v237, %v160
    %vm284 = vcmp.eq.s32.totalorder %v244, %v160
    %vm285 = vcmp.eq.s32.totalorder %v251, %v160
    %vm286 = vcmp.eq.s32.totalorder %v258, %v160
    %vm287 = vcmp.eq.s32.totalorder %v265, %v160
    %vm288 = vcmp.eq.s32.totalorder %v272, %v160
    %v289 = vsel %vm273, 1, 0
    %v290 = vsel %vm274, 1, 0
    %v291 = vsel %vm275, 1, 0
    %v292 = vsel %vm276, 1, 0
    %v293 = vsel %vm277, 1, 0
    %v294 = vsel %vm278, 1, 0
    %v295 = vsel %vm279, 1, 0
    %v296 = vsel %vm280, 1, 0
    %v297 = vsel %vm281, 1, 0
    %v298 = vsel %vm282, 1, 0
    %v299 = vsel %vm283, 1, 0
    %v300 = vsel %vm284, 1, 0
    %v301 = vsel %vm285, 1, 0
    %v302 = vsel %vm286, 1, 0
    %v303 = vsel %vm287, 1, 0
    %v304 = vsel %vm288, 1, 0
    %v305 = vcvt.s32.f32 %v289
    %v306 = vcvt.s32.f32 %v290
    %v307 = vcvt.s32.f32 %v291
    %v308 = vcvt.s32.f32 %v292
    %v309 = vcvt.s32.f32 %v293
    %v310 = vcvt.s32.f32 %v294
    %v311 = vcvt.s32.f32 %v295
    %v312 = vcvt.s32.f32 %v296
    %v313 = vcvt.s32.f32 %v297
    %v314 = vcvt.s32.f32 %v298
    %v315 = vcvt.s32.f32 %v299
    %v316 = vcvt.s32.f32 %v300
    %v317 = vcvt.s32.f32 %v301
    %v318 = vcvt.s32.f32 %v302
    %v319 = vcvt.s32.f32 %v303
    %v320 = vcvt.s32.f32 %v304
    %v321 = vld [vmem:[%s1] sm:$0xff]
    %v322 = vld [vmem:[%s1 + $0x8] sm:$0xff]
    %v323 = vld [vmem:[%s1 + $0x10] sm:$0xff]
    %v324 = vld [vmem:[%s1 + $0x18] sm:$0xff]
    %v325 = vld [vmem:[%s1 + $0x20] sm:$0xff]
    %v326 = vld [vmem:[%s1 + $0x28] sm:$0xff]
    %v327 = vld [vmem:[%s1 + $0x30] sm:$0xf]
    %344 = vst [vmem:[#allocation1] ss:$2 sm:$0xff] %v305
    %s345 = scalar_lea.vmem [#allocation1], 1
    %346 = vst [vmem:[%s345] ss:$2 sm:$0xff] %v306
    %s347 = scalar_lea.vmem [#allocation1], 16
    %348 = vst [vmem:[%s347] ss:$2 sm:$0xff] %v307
    %s349 = scalar_lea.vmem [#allocation1], 17
    %350 = vst [vmem:[%s349] ss:$2 sm:$0xff] %v308
    %s351 = scalar_lea.vmem [#allocation1], 32
    %352 = vst [vmem:[%s351] ss:$2 sm:$0xff] %v309
    %s353 = scalar_lea.vmem [#allocation1], 33
    %354 = vst [vmem:[%s353] ss:$2 sm:$0xff] %v310
    %s355 = scalar_lea.vmem [#allocation1], 48
    %356 = vst [vmem:[%s355] ss:$2 sm:$0xff] %v311
    %s357 = scalar_lea.vmem [#allocation1], 49
    %358 = vst [vmem:[%s357] ss:$2 sm:$0xff] %v312
    %v359 = vld.sshfl [vmem:[#allocation1] sm:$0xff pattern:$0x75316420]
    %v360 = vld.sshfl [vmem:[#allocation1 + $0x10] sm:$0xff pattern:$0x75316420]
    %v361 = vld.sshfl [vmem:[#allocation1 + $0x20] sm:$0xff pattern:$0x75316420]
    %v362 = vld.sshfl [vmem:[#allocation1 + $0x30] sm:$0xff pattern:$0x75316420]
    %363 = vst [vmem:[#allocation1] ss:$2 sm:$0xff] %v313
    %364 = vst [vmem:[%s345] ss:$2 sm:$0xff] %v314
    %365 = vst [vmem:[%s347] ss:$2 sm:$0xff] %v315
    %366 = vst [vmem:[%s349] ss:$2 sm:$0xff] %v316
    %367 = vst [vmem:[%s351] ss:$2 sm:$0xff] %v317
    %368 = vst [vmem:[%s353] ss:$2 sm:$0xff] %v318
    %369 = vst [vmem:[%s355] ss:$2 sm:$0xff] %v319
    %370 = vst [vmem:[%s357] ss:$2 sm:$0xff] %v320
    %v371 = vld.sshfl [vmem:[#allocation1] sm:$0xff pattern:$0x75316420]
    %v372 = vld.sshfl [vmem:[#allocation1 + $0x10] sm:$0xff pattern:$0x75316420]
    %v373 = vld.sshfl [vmem:[#allocation1 + $0x20] sm:$0xff pattern:$0x75316420]
    %v374 = vld.sshfl [vmem:[#allocation1 + $0x30] sm:$0xff pattern:$0x75316420]
    %vm375 = vcmask 424960
    %v376 = vsel %vm375, %v359, 0
    %v378 = vsel %vm375, %v360, 0
    %v380 = vsel %vm375, %v361, 0
    %v382 = vsel %vm375, %v362, 0
    %v384 = vsel %vm375, %v371, 0
    %v386 = vsel %vm375, %v372, 0
    %v388 = vsel %vm375, %v373, 0
    %v390 = vsel %vm375, %v374, 0
    %vm392 = vcmask 1043456
    %v394 = vsel %vm392, %v327, 0
    %396 = vmatpush.msra.mxu0 0.0
    %397 = vmatpush.msra.mxu0 0.0
    %398 = vmatpush.msra.mxu0 0.0
    %399 = vmatpush.msra.mxu0 0.0
    %400 = vmatpush.msra.mxu0 0.0
    %401 = vmatpush.msra.mxu0 0.0
    %402 = vmatpush.msra.mxu0 0.0
    %403 = vmatpush.msra.mxu0 0.0
    %404 = vmatpush.msra.mxu0 0.0
    %405 = vmatpush.msra.mxu0 %v394
    %406 = vmatpush.msra.mxu0 %v326
    %407 = vmatpush.msra.mxu0 %v325
    %408 = vmatpush.msra.mxu0 %v324
    %409 = vmatpush.msra.mxu0 %v323
    %410 = vmatpush.msra.mxu0 %v322
    %411 = vmatpush.msra.mxu0 %v321
    %412 = vmatmul.f32.gmra.mxu0 %v376
    %v413 = vpop.f32.mrf.mxu0
    %v414 = vadd.f32 0.0, %v413
    %415 = vmatmul.f32.gmra.mxu0 %v378
    %v416 = vpop.f32.mrf.mxu0
    %v417 = vadd.f32 0.0, %v416
    %418 = vmatmul.f32.gmra.mxu0 %v380
    %v419 = vpop.f32.mrf.mxu0
    %v420 = vadd.f32 0.0, %v419
    %421 = vmatmul.f32.gmra.mxu0 %v382
    %v422 = vpop.f32.mrf.mxu0
    %v423 = vadd.f32 0.0, %v422
    %424 = vmatmul.f32.gmra.mxu0 %v384
    %v425 = vpop.f32.mrf.mxu0
    %v426 = vadd.f32 0.0, %v425
    %427 = vmatmul.f32.gmra.mxu0 %v386
    %v428 = vpop.f32.mrf.mxu0
    %v429 = vadd.f32 0.0, %v428
    %430 = vmatmul.f32.gmra.mxu0 %v388
    %v431 = vpop.f32.mrf.mxu0
    %v432 = vadd.f32 0.0, %v431
    %433 = vmatmul.f32.gmra.mxu0 %v390
    %v434 = vpop.f32.mrf.mxu0
    %v435 = vadd.f32 0.0, %v434
    %436 = vdwg.mxu0
    %v445 = vrot.slane %v414, 4
    %v446 = vrot.slane %v417, 4
    %v447 = vrot.slane %v420, 4
    %v448 = vrot.slane %v423, 4
    %v449 = vrot.slane %v426, 4
    %v450 = vrot.slane %v429, 4
    %v451 = vrot.slane %v432, 4
    %v452 = vrot.slane %v435, 4
    %vm461 = vcmask 257024
    %462 = vst.msk [vmem:[#allocation2] sm:$0xf] %vm461, %v414
    %463 = vst.msk [vmem:[#allocation2 + $0x4] sm:$0xf] %vm461, %v445
    %464 = vst.msk [vmem:[#allocation2 + $0x8] sm:$0xf] %vm461, %v417
    %465 = vst.msk [vmem:[#allocation2 + $0xc] sm:$0xf] %vm461, %v446
    %466 = vst.msk [vmem:[#allocation2 + $0x10] sm:$0xf] %vm461, %v420
    %467 = vst.msk [vmem:[#allocation2 + $0x14] sm:$0xf] %vm461, %v447
    %468 = vst.msk [vmem:[#allocation2 + $0x18] sm:$0xf] %vm461, %v423
    %469 = vst.msk [vmem:[#allocation2 + $0x1c] sm:$0xf] %vm461, %v448
    %470 = vst.msk [vmem:[#allocation2 + $0x20] sm:$0xf] %vm461, %v426
    %471 = vst.msk [vmem:[#allocation2 + $0x24] sm:$0xf] %vm461, %v449
    %472 = vst.msk [vmem:[#allocation2 + $0x28] sm:$0xf] %vm461, %v429
    %473 = vst.msk [vmem:[#allocation2 + $0x2c] sm:$0xf] %vm461, %v450
    %474 = vst.msk [vmem:[#allocation2 + $0x30] sm:$0xf] %vm461, %v432
    %475 = vst.msk [vmem:[#allocation2 + $0x34] sm:$0xf] %vm461, %v451
    %476 = vst.msk [vmem:[#allocation2 + $0x38] sm:$0xf] %vm461, %v435
    %477 = vst.msk [vmem:[#allocation2 + $0x3c] sm:$0xf] %vm461, %v452
    %v478 = vld [vmem:[#allocation5] sm:$0xff]
    %v479 = vld [vmem:[#allocation5 + $0x8] sm:$0xff]
    %v480 = vld [vmem:[#allocation5 + $0x10] sm:$0xff]
    %v481 = vld [vmem:[#allocation5 + $0x18] sm:$0xff]
    %v482 = vld [vmem:[#allocation5 + $0x20] sm:$0xff]
    %v483 = vld [vmem:[#allocation5 + $0x28] sm:$0xff]
    %v484 = vld [vmem:[#allocation5 + $0x30] sm:$0xff]
    %v485 = vld [vmem:[#allocation5 + $0x38] sm:$0xff]
    %v486 = vld [vmem:[#allocation5 + $0x40] sm:$0xff]
    %v487 = vld [vmem:[#allocation5 + $0x48] sm:$0xff]
    %v488 = vld [vmem:[#allocation5 + $0x50] sm:$0xff]
    %v489 = vld [vmem:[#allocation5 + $0x58] sm:$0xff]
    %v490 = vld [vmem:[#allocation5 + $0x60] sm:$0xff]
    %v491 = vld [vmem:[#allocation5 + $0x68] sm:$0xff]
    %v492 = vld [vmem:[#allocation5 + $0x70] sm:$0xff]
    %v493 = vld [vmem:[#allocation5 + $0x78] sm:$0xff]
    %v494 = vld [vmem:[#allocation8] sm:$0xff]
    %v495 = vld [vmem:[#allocation8 + $0x8] sm:$0xff]
    %v496 = vld [vmem:[#allocation8 + $0x10] sm:$0xff]
    %v497 = vld [vmem:[#allocation8 + $0x18] sm:$0xff]
    %v498 = vld [vmem:[#allocation8 + $0x20] sm:$0xff]
    %v499 = vld [vmem:[#allocation8 + $0x28] sm:$0xff]
    %v500 = vld [vmem:[#allocation8 + $0x30] sm:$0xff]
    %v501 = vld [vmem:[#allocation8 + $0x38] sm:$0xff]
    %v502 = vld [vmem:[#allocation8 + $0x40] sm:$0xff]
    %v503 = vld [vmem:[#allocation8 + $0x48] sm:$0xff]
    %v504 = vld [vmem:[#allocation8 + $0x50] sm:$0xff]
    %v505 = vld [vmem:[#allocation8 + $0x58] sm:$0xff]
    %v506 = vld [vmem:[#allocation8 + $0x60] sm:$0xff]
    %v507 = vld [vmem:[#allocation8 + $0x68] sm:$0xff]
    %v508 = vld [vmem:[#allocation8 + $0x70] sm:$0xff]
    %v509 = vld [vmem:[#allocation8 + $0x78] sm:$0xff]
    %v510 = vld [vmem:[#allocation8 + $0x80] sm:$0xff]
    %v511 = vld [vmem:[#allocation8 + $0x88] sm:$0xff]
    %v512 = vld [vmem:[#allocation8 + $0x90] sm:$0xff]
    %v513 = vld [vmem:[#allocation8 + $0x98] sm:$0xff]
    %v514 = vld [vmem:[#allocation8 + $0xa0] sm:$0xff]
    %v515 = vld [vmem:[#allocation8 + $0xa8] sm:$0xff]
    %v516 = vld [vmem:[#allocation8 + $0xb0] sm:$0xff]
    %v517 = vld [vmem:[#allocation8 + $0xb8] sm:$0xff]
    %v518 = vld [vmem:[#allocation8 + $0xc0] sm:$0xff]
    %v519 = vld [vmem:[#allocation8 + $0xc8] sm:$0xff]
    %v520 = vld [vmem:[#allocation8 + $0xd0] sm:$0xff]
    %v521 = vld [vmem:[#allocation8 + $0xd8] sm:$0xff]
    %v522 = vld [vmem:[#allocation8 + $0xe0] sm:$0xff]
    %v523 = vld [vmem:[#allocation8 + $0xe8] sm:$0xff]
    %v524 = vld [vmem:[#allocation8 + $0xf0] sm:$0xff]
    %v525 = vld [vmem:[#allocation8 + $0xf8] sm:$0xff]
    %v526 = vld [vmem:[#allocation8 + $0x100] sm:$0xff]
    %v527 = vld [vmem:[#allocation8 + $0x108] sm:$0xff]
    %v528 = vld [vmem:[#allocation8 + $0x110] sm:$0xff]
    %v529 = vld [vmem:[#allocation8 + $0x118] sm:$0xff]
    %v530 = vld [vmem:[#allocation8 + $0x120] sm:$0xff]
    %v531 = vld [vmem:[#allocation8 + $0x128] sm:$0xff]
    %v532 = vld [vmem:[#allocation8 + $0x130] sm:$0xff]
    %v533 = vld [vmem:[#allocation8 + $0x138] sm:$0xff]
    %v534 = vld [vmem:[#allocation8 + $0x140] sm:$0xff]
    %v535 = vld [vmem:[#allocation8 + $0x148] sm:$0xff]
    %v536 = vld [vmem:[#allocation8 + $0x150] sm:$0xff]
    %v537 = vld [vmem:[#allocation8 + $0x158] sm:$0xff]
    %v538 = vld [vmem:[#allocation8 + $0x160] sm:$0xff]
    %v539 = vld [vmem:[#allocation8 + $0x168] sm:$0xff]
    %v540 = vld [vmem:[#allocation8 + $0x170] sm:$0xff]
    %v541 = vld [vmem:[#allocation8 + $0x178] sm:$0xff]
    %v542 = vld [vmem:[#allocation8 + $0x180] sm:$0xff]
    %v543 = vld [vmem:[#allocation8 + $0x188] sm:$0xff]
    %v544 = vld [vmem:[#allocation8 + $0x190] sm:$0xff]
    %v545 = vld [vmem:[#allocation8 + $0x198] sm:$0xff]
    %v546 = vld [vmem:[#allocation8 + $0x1a0] sm:$0xff]
    %v547 = vld [vmem:[#allocation8 + $0x1a8] sm:$0xff]
    %v548 = vld [vmem:[#allocation8 + $0x1b0] sm:$0xff]
    %v549 = vld [vmem:[#allocation8 + $0x1b8] sm:$0xff]
    %v550 = vld [vmem:[#allocation8 + $0x1c0] sm:$0xff]
    %v551 = vld [vmem:[#allocation8 + $0x1c8] sm:$0xff]
    %v552 = vld [vmem:[#allocation8 + $0x1d0] sm:$0xff]
    %v553 = vld [vmem:[#allocation8 + $0x1d8] sm:$0xff]
    %v554 = vld [vmem:[#allocation8 + $0x1e0] sm:$0xff]
    %v555 = vld [vmem:[#allocation8 + $0x1e8] sm:$0xff]
    %v556 = vld [vmem:[#allocation8 + $0x1f0] sm:$0xff]
    %v557 = vld [vmem:[#allocation8 + $0x1f8] sm:$0xff]
    %v558 = vld [vmem:[%s4] sm:$0xf]
    %v559 = vld [vmem:[#allocation10] sm:$0xff]
    %v560 = vld [vmem:[#allocation10 + $0x8] sm:$0xff]
    %v561 = vld [vmem:[#allocation10 + $0x10] sm:$0xff]
    %v562 = vld [vmem:[#allocation10 + $0x18] sm:$0xff]
    %v563 = vld [vmem:[#allocation10 + $0x20] sm:$0xff]
    %v564 = vld [vmem:[#allocation10 + $0x28] sm:$0xff]
    %v565 = vld [vmem:[#allocation10 + $0x30] sm:$0xff]
    %v566 = vld [vmem:[#allocation10 + $0x38] sm:$0xff]
    %v567 = vld [vmem:[#allocation10 + $0x40] sm:$0xff]
    %v568 = vld [vmem:[#allocation10 + $0x48] sm:$0xff]
    %v569 = vld [vmem:[#allocation10 + $0x50] sm:$0xff]
    %v570 = vld [vmem:[#allocation10 + $0x58] sm:$0xff]
    %v571 = vld [vmem:[#allocation10 + $0x60] sm:$0xff]
    %v572 = vld [vmem:[#allocation10 + $0x68] sm:$0xff]
    %v573 = vld [vmem:[#allocation10 + $0x70] sm:$0xff]
    %v574 = vld [vmem:[#allocation10 + $0x78] sm:$0xff]
    %v575 = vld [vmem:[#allocation11] sm:$0xff]
    %v576 = vld [vmem:[#allocation11 + $0x8] sm:$0xff]
    %v577 = vld [vmem:[#allocation11 + $0x10] sm:$0xff]
    %v578 = vld [vmem:[#allocation11 + $0x18] sm:$0xff]
    %v579 = vld [vmem:[#allocation11 + $0x20] sm:$0xff]
    %v580 = vld [vmem:[#allocation11 + $0x28] sm:$0xff]
    %v581 = vld [vmem:[#allocation11 + $0x30] sm:$0xff]
    %v582 = vld [vmem:[#allocation11 + $0x38] sm:$0xff]
    %v583 = vld [vmem:[#allocation11 + $0x40] sm:$0xff]
    %v584 = vld [vmem:[#allocation11 + $0x48] sm:$0xff]
    %v585 = vld [vmem:[#allocation11 + $0x50] sm:$0xff]
    %v586 = vld [vmem:[#allocation11 + $0x58] sm:$0xff]
    %v587 = vld [vmem:[#allocation11 + $0x60] sm:$0xff]
    %v588 = vld [vmem:[#allocation11 + $0x68] sm:$0xff]
    %v589 = vld [vmem:[#allocation11 + $0x70] sm:$0xff]
    %v590 = vld [vmem:[#allocation11 + $0x78] sm:$0xff]
    %v591 = vld [vmem:[#allocation11 + $0x80] sm:$0xff]
    %v592 = vld [vmem:[#allocation11 + $0x88] sm:$0xff]
    %v593 = vld [vmem:[#allocation11 + $0x90] sm:$0xff]
    %v594 = vld [vmem:[#allocation11 + $0x98] sm:$0xff]
    %v595 = vld [vmem:[#allocation11 + $0xa0] sm:$0xff]
    %v596 = vld [vmem:[#allocation11 + $0xa8] sm:$0xff]
    %v597 = vld [vmem:[#allocation11 + $0xb0] sm:$0xff]
    %v598 = vld [vmem:[#allocation11 + $0xb8] sm:$0xff]
    %v599 = vld [vmem:[#allocation11 + $0xc0] sm:$0xff]
    %v600 = vld [vmem:[#allocation11 + $0xc8] sm:$0xff]
    %v601 = vld [vmem:[#allocation11 + $0xd0] sm:$0xff]
    %v602 = vld [vmem:[#allocation11 + $0xd8] sm:$0xff]
    %v603 = vld [vmem:[#allocation11 + $0xe0] sm:$0xff]
    %v604 = vld [vmem:[#allocation11 + $0xe8] sm:$0xff]
    %v605 = vld [vmem:[#allocation11 + $0xf0] sm:$0xff]
    %v606 = vld [vmem:[#allocation11 + $0xf8] sm:$0xff]
    %v607 = vld [vmem:[#allocation11 + $0x100] sm:$0xff]
    %v608 = vld [vmem:[#allocation11 + $0x108] sm:$0xff]
    %v609 = vld [vmem:[#allocation11 + $0x110] sm:$0xff]
    %v610 = vld [vmem:[#allocation11 + $0x118] sm:$0xff]
    %v611 = vld [vmem:[#allocation11 + $0x120] sm:$0xff]
    %v612 = vld [vmem:[#allocation11 + $0x128] sm:$0xff]
    %v613 = vld [vmem:[#allocation11 + $0x130] sm:$0xff]
    %v614 = vld [vmem:[#allocation11 + $0x138] sm:$0xff]
    %v615 = vld [vmem:[#allocation11 + $0x140] sm:$0xff]
    %v616 = vld [vmem:[#allocation11 + $0x148] sm:$0xff]
    %v617 = vld [vmem:[#allocation11 + $0x150] sm:$0xff]
    %v618 = vld [vmem:[#allocation11 + $0x158] sm:$0xff]
    %v619 = vld [vmem:[#allocation11 + $0x160] sm:$0xff]
    %v620 = vld [vmem:[#allocation11 + $0x168] sm:$0xff]
    %v621 = vld [vmem:[#allocation11 + $0x170] sm:$0xff]
    %v622 = vld [vmem:[#allocation11 + $0x178] sm:$0xff]
    %v623 = vld [vmem:[#allocation11 + $0x180] sm:$0xff]
    %v624 = vld [vmem:[#allocation11 + $0x188] sm:$0xff]
    %v625 = vld [vmem:[#allocation11 + $0x190] sm:$0xff]
    %v626 = vld [vmem:[#allocation11 + $0x198] sm:$0xff]
    %v627 = vld [vmem:[#allocation11 + $0x1a0] sm:$0xff]
    %v628 = vld [vmem:[#allocation11 + $0x1a8] sm:$0xff]
    %v629 = vld [vmem:[#allocation11 + $0x1b0] sm:$0xff]
    %v630 = vld [vmem:[#allocation11 + $0x1b8] sm:$0xff]
    %v631 = vld [vmem:[#allocation11 + $0x1c0] sm:$0xff]
    %v632 = vld [vmem:[#allocation11 + $0x1c8] sm:$0xff]
    %v633 = vld [vmem:[#allocation11 + $0x1d0] sm:$0xff]
    %v634 = vld [vmem:[#allocation11 + $0x1d8] sm:$0xff]
    %v635 = vld [vmem:[#allocation11 + $0x1e0] sm:$0xff]
    %v636 = vld [vmem:[#allocation11 + $0x1e8] sm:$0xff]
    %v637 = vld [vmem:[#allocation11 + $0x1f0] sm:$0xff]
    %v638 = vld [vmem:[#allocation11 + $0x1f8] sm:$0xff]
    %v639 = vld [vmem:[%s7] sm:$0xf]
    loop: start=0, step=1, limit=16
    $region86: #{rcnn_forward.1} parent=1 // loop_pre_header
      _
    $region87: #{rcnn_forward.1} parent=1 // loop_header
      %s641 = sphi 0, %s645
      %p642 = scmp.ge.s32.totalorder %s641, 16
      %v646 = vphi 0.0, %v890
      %v647 = vphi 0.0, %v888
    $region88: #{rcnn_forward.1} parent=1 // loop_header_branch
      %644 = sbr.rel (%p642) target = $region92
    $region89: #{rcnn_forward.1} parent=1 // loop_body
      %s648 = smul.u32 %s641, 4
      %s649 = scalar_lea.vmem [#allocation2], %s648
      %v650 = vld [vmem:[%s649] sm:$0xf]
      %651 = vmatpush.msra.mxu0 %v554
      %652 = vmatpush.msra.mxu0 %v550
      %653 = vmatpush.msra.mxu0 %v546
      %654 = vmatpush.msra.mxu0 %v542
      %655 = vmatpush.msra.mxu0 %v538
      %656 = vmatpush.msra.mxu0 %v534
      %657 = vmatpush.msra.mxu0 %v530
      %658 = vmatpush.msra.mxu0 %v526
      %659 = vmatpush.msra.mxu0 %v522
      %660 = vmatpush.msra.mxu0 %v518
      %661 = vmatpush.msra.mxu0 %v514
      %662 = vmatpush.msra.mxu0 %v510
      %663 = vmatpush.msra.mxu0 %v506
      %664 = vmatpush.msra.mxu0 %v502
      %665 = vmatpush.msra.mxu0 %v498
      %666 = vmatpush.msra.mxu0 %v494
      %667 = vmatmul.f32.gmra.mxu0 %v646
      %v668 = vpop.f32.mrf.mxu0
      %v669 = vadd.f32 0.0, %v668
      %670 = vdwg.mxu0
      %671 = vmatpush.msra.mxu0 %v555
      %672 = vmatpush.msra.mxu0 %v551
      %673 = vmatpush.msra.mxu0 %v547
      %674 = vmatpush.msra.mxu0 %v543
      %675 = vmatpush.msra.mxu0 %v539
      %676 = vmatpush.msra.mxu0 %v535
      %677 = vmatpush.msra.mxu0 %v531
      %678 = vmatpush.msra.mxu0 %v527
      %679 = vmatpush.msra.mxu0 %v523
      %680 = vmatpush.msra.mxu0 %v519
      %681 = vmatpush.msra.mxu0 %v515
      %682 = vmatpush.msra.mxu0 %v511
      %683 = vmatpush.msra.mxu0 %v507
      %684 = vmatpush.msra.mxu0 %v503
      %685 = vmatpush.msra.mxu0 %v499
      %686 = vmatpush.msra.mxu0 %v495
      %687 = vmatmul.f32.gmra.mxu0 %v646
      %v688 = vpop.f32.mrf.mxu0
      %v689 = vadd.f32 0.0, %v688
      %690 = vdwg.mxu0
      %691 = vmatpush.msra.mxu0 %v556
      %692 = vmatpush.msra.mxu0 %v552
      %693 = vmatpush.msra.mxu0 %v548
      %694 = vmatpush.msra.mxu0 %v544
      %695 = vmatpush.msra.mxu0 %v540
      %696 = vmatpush.msra.mxu0 %v536
      %697 = vmatpush.msra.mxu0 %v532
      %698 = vmatpush.msra.mxu0 %v528
      %699 = vmatpush.msra.mxu0 %v524
      %700 = vmatpush.msra.mxu0 %v520
      %701 = vmatpush.msra.mxu0 %v516
      %702 = vmatpush.msra.mxu0 %v512
      %703 = vmatpush.msra.mxu0 %v508
      %704 = vmatpush.msra.mxu0 %v504
      %705 = vmatpush.msra.mxu0 %v500
      %706 = vmatpush.msra.mxu0 %v496
      %707 = vmatmul.f32.gmra.mxu0 %v646
      %v708 = vpop.f32.mrf.mxu0
      %v709 = vadd.f32 0.0, %v708
      %710 = vdwg.mxu0
      %711 = vmatpush.msra.mxu0 %v557
      %712 = vmatpush.msra.mxu0 %v553
      %713 = vmatpush.msra.mxu0 %v549
      %714 = vmatpush.msra.mxu0 %v545
      %715 = vmatpush.msra.mxu0 %v541
      %716 = vmatpush.msra.mxu0 %v537
      %717 = vmatpush.msra.mxu0 %v533
      %718 = vmatpush.msra.mxu0 %v529
      %719 = vmatpush.msra.mxu0 %v525
      %720 = vmatpush.msra.mxu0 %v521
      %721 = vmatpush.msra.mxu0 %v517
      %722 = vmatpush.msra.mxu0 %v513
      %723 = vmatpush.msra.mxu0 %v509
      %724 = vmatpush.msra.mxu0 %v505
      %725 = vmatpush.msra.mxu0 %v501
      %726 = vmatpush.msra.mxu0 %v497
      %727 = vmatmul.f32.gmra.mxu0 %v646
      %v728 = vpop.f32.mrf.mxu0
      %v729 = vadd.f32 0.0, %v728
      %730 = vdwg.mxu0
      %vm731 = vcmask 261120
      %v733 = vsel %vm731, %v650, 0
      %735 = vmatpush.msra.mxu0 0.0
      %736 = vmatpush.msra.mxu0 0.0
      %737 = vmatpush.msra.mxu0 0.0
      %738 = vmatpush.msra.mxu0 0.0
      %739 = vmatpush.msra.mxu0 0.0
      %740 = vmatpush.msra.mxu0 0.0
      %741 = vmatpush.msra.mxu0 0.0
      %742 = vmatpush.msra.mxu0 0.0
      %743 = vmatpush.msra.mxu0 0.0
      %744 = vmatpush.msra.mxu0 0.0
      %745 = vmatpush.msra.mxu0 0.0
      %746 = vmatpush.msra.mxu0 0.0
      %747 = vmatpush.msra.mxu0 %v490
      %748 = vmatpush.msra.mxu0 %v486
      %749 = vmatpush.msra.mxu0 %v482
      %750 = vmatpush.msra.mxu0 %v478
      %751 = vmatmul.f32.gmra.mxu0 %v733
      %v752 = vpop.f32.mrf.mxu0
      %v753 = vadd.f32 %v669, %v752
      %754 = vdwg.mxu0
      %755 = vmatpush.msra.mxu0 0.0
      %756 = vmatpush.msra.mxu0 0.0
      %757 = vmatpush.msra.mxu0 0.0
      %758 = vmatpush.msra.mxu0 0.0
      %759 = vmatpush.msra.mxu0 0.0
      %760 = vmatpush.msra.mxu0 0.0
      %761 = vmatpush.msra.mxu0 0.0
      %762 = vmatpush.msra.mxu0 0.0
      %763 = vmatpush.msra.mxu0 0.0
      %764 = vmatpush.msra.mxu0 0.0
      %765 = vmatpush.msra.mxu0 0.0
      %766 = vmatpush.msra.mxu0 0.0
      %767 = vmatpush.msra.mxu0 %v491
      %768 = vmatpush.msra.mxu0 %v487
      %769 = vmatpush.msra.mxu0 %v483
      %770 = vmatpush.msra.mxu0 %v479
      %771 = vmatmul.f32.gmra.mxu0 %v733
      %v772 = vpop.f32.mrf.mxu0
      %v773 = vadd.f32 %v689, %v772
      %774 = vdwg.mxu0
      %775 = vmatpush.msra.mxu0 0.0
      %776 = vmatpush.msra.mxu0 0.0
      %777 = vmatpush.msra.mxu0 0.0
      %778 = vmatpush.msra.mxu0 0.0
      %779 = vmatpush.msra.mxu0 0.0
      %780 = vmatpush.msra.mxu0 0.0
      %781 = vmatpush.msra.mxu0 0.0
      %782 = vmatpush.msra.mxu0 0.0
      %783 = vmatpush.msra.mxu0 0.0
      %784 = vmatpush.msra.mxu0 0.0
      %785 = vmatpush.msra.mxu0 0.0
      %786 = vmatpush.msra.mxu0 0.0
      %787 = vmatpush.msra.mxu0 %v492
      %788 = vmatpush.msra.mxu0 %v488
      %789 = vmatpush.msra.mxu0 %v484
      %790 = vmatpush.msra.mxu0 %v480
      %791 = vmatmul.f32.gmra.mxu0 %v733
      %v792 = vpop.f32.mrf.mxu0
      %v793 = vadd.f32 %v709, %v792
      %794 = vdwg.mxu0
      %795 = vmatpush.msra.mxu0 0.0
      %796 = vmatpush.msra.mxu0 0.0
      %797 = vmatpush.msra.mxu0 0.0
      %798 = vmatpush.msra.mxu0 0.0
      %799 = vmatpush.msra.mxu0 0.0
      %800 = vmatpush.msra.mxu0 0.0
      %801 = vmatpush.msra.mxu0 0.0
      %802 = vmatpush.msra.mxu0 0.0
      %803 = vmatpush.msra.mxu0 0.0
      %804 = vmatpush.msra.mxu0 0.0
      %805 = vmatpush.msra.mxu0 0.0
      %806 = vmatpush.msra.mxu0 0.0
      %807 = vmatpush.msra.mxu0 %v493
      %808 = vmatpush.msra.mxu0 %v489
      %809 = vmatpush.msra.mxu0 %v485
      %810 = vmatpush.msra.mxu0 %v481
      %811 = vmatmul.f32.gmra.mxu0 %v733
      %v812 = vpop.f32.mrf.mxu0
      %v813 = vadd.f32 %v729, %v812
      %814 = vdwg.mxu0
      %v816 = vperm.slane %v558, 0
      %v817 = vperm.slane %v558, 1
      %v818 = vperm.slane %v558, 2
      %v819 = vperm.slane %v558, 3
      %v824 = vadd.f32 %v753, %v816
      %v825 = vadd.f32 %v773, %v817
      %v826 = vadd.f32 %v793, %v818
      %v827 = vadd.f32 %v813, %v819
      %v828 = vsub.f32 0.0, %v824
      %v829 = vmul.f32 %v828, 1.442695
      %v830 = vpow.pop %v829
      %v831 = vadd.f32 %v830, 1.0
      %v832 = vrcp.pop %v831
      %v833 = vmul.f32 %v831, %v832
      %v834 = vsub.f32 1.0, %v833
      %v835 = vmul.f32 %v832, %v834
      %v836 = vadd.f32 %v832, %v835
      %vm837 = vweird.f32 %v831
      %vm838 = vweird.f32 %v832
      %vm839 = vmor %vm837, %vm838
      %v840 = vsel %vm839, %v832, %v836
      %v841 = vand.u32 2147483647, %v831
      %vm842 = vcmp.eq.f32.partialorder %v841, 8.507059e+37
      %v843 = vand.u32 %v831, 2147483648
      %v844 = vor.u32 1.1754944e-38, %v843
      %v845 = vsel %vm842, %v844, %v840
      %v846 = vmul.f32 1.0, %v845
      %v847 = vsub.f32 0.0, %v825
      %v848 = vmul.f32 %v847, 1.442695
      %v849 = vpow.pop %v848
      %v850 = vadd.f32 %v849, 1.0
      %v851 = vrcp.pop %v850
      %v852 = vmul.f32 %v850, %v851
      %v853 = vsub.f32 1.0, %v852
      %v854 = vmul.f32 %v851, %v853
      %v855 = vadd.f32 %v851, %v854
      %vm856 = vweird.f32 %v850
      %vm857 = vweird.f32 %v851
      %vm858 = vmor %vm856, %vm857
      %v859 = vsel %vm858, %v851, %v855
      %v860 = vand.u32 2147483647, %v850
      %vm861 = vcmp.eq.f32.partialorder %v860, 8.507059e+37
      %v862 = vand.u32 %v850, 2147483648
      %v863 = vor.u32 1.1754944e-38, %v862
      %v864 = vsel %vm861, %v863, %v859
      %v865 = vmul.f32 1.0, %v864
      %v866 = vtanh.pop %v826
      %v867 = vsub.f32 0.0, %v827
      %v868 = vmul.f32 %v867, 1.442695
      %v869 = vpow.pop %v868
      %v870 = vadd.f32 %v869, 1.0
      %v871 = vrcp.pop %v870
      %v872 = vmul.f32 %v870, %v871
      %v873 = vsub.f32 1.0, %v872
      %v874 = vmul.f32 %v871, %v873
      %v875 = vadd.f32 %v871, %v874
      %vm876 = vweird.f32 %v870
      %vm877 = vweird.f32 %v871
      %vm878 = vmor %vm876, %vm877
      %v879 = vsel %vm878, %v871, %v875
      %v880 = vand.u32 2147483647, %v870
      %vm881 = vcmp.eq.f32.partialorder %v880, 8.507059e+37
      %v882 = vand.u32 %v870, 2147483648
      %v883 = vor.u32 1.1754944e-38, %v882
      %v884 = vsel %vm881, %v883, %v879
      %v885 = vmul.f32 1.0, %v884
      %v886 = vmul.f32 %v865, %v647
      %v887 = vmul.f32 %v846, %v866
      %v888 = vadd.f32 %v886, %v887
      %v889 = vtanh.pop %v888
      %v890 = vmul.f32 %v885, %v889
      %s891 = scalar_lea.vmem [#allocation3], %s648
      %892 = vst [vmem:[%s891] sm:$0xf] %v890
    $region90: #{rcnn_forward.1} parent=1 // loop_footer
      %s645 = sadd.s32 1, %s641
    $region91: #{rcnn_forward.1} parent=1 // loop_footer_branch
      %640 = sbr.rel target = $region87
    $region92: #{rcnn_forward.1} parent=1 // loop_exit
      _
    loop: start=0, step=1, limit=16
    $region93: #{rcnn_forward.1} parent=1 // loop_pre_header
      _
    $region94: #{rcnn_forward.1} parent=1 // loop_header
      %s894 = sphi 0, %s898
      %p895 = scmp.ge.s32.totalorder %s894, 16
      %v899 = vphi 0.0, %v1144
      %v900 = vphi 0.0, %v1142
    $region95: #{rcnn_forward.1} parent=1 // loop_header_branch
      %897 = sbr.rel (%p895) target = $region99
    $region96: #{rcnn_forward.1} parent=1 // loop_body
      %s901 = ssub.s32 15, %s894
      %s902 = smul.u32 %s901, 4
      %s903 = scalar_lea.vmem [#allocation2], %s902
      %v904 = vld [vmem:[%s903] sm:$0xf]
      %905 = vmatpush.msra.mxu0 %v635
      %906 = vmatpush.msra.mxu0 %v631
      %907 = vmatpush.msra.mxu0 %v627
      %908 = vmatpush.msra.mxu0 %v623
      %909 = vmatpush.msra.mxu0 %v619
      %910 = vmatpush.msra.mxu0 %v615
      %911 = vmatpush.msra.mxu0 %v611
      %912 = vmatpush.msra.mxu0 %v607
      %913 = vmatpush.msra.mxu0 %v603
      %914 = vmatpush.msra.mxu0 %v599
      %915 = vmatpush.msra.mxu0 %v595
      %916 = vmatpush.msra.mxu0 %v591
      %917 = vmatpush.msra.mxu0 %v587
      %918 = vmatpush.msra.mxu0 %v583
      %919 = vmatpush.msra.mxu0 %v579
      %920 = vmatpush.msra.mxu0 %v575
      %921 = vmatmul.f32.gmra.mxu0 %v899
      %v922 = vpop.f32.mrf.mxu0
      %v923 = vadd.f32 0.0, %v922
      %924 = vdwg.mxu0
      %925 = vmatpush.msra.mxu0 %v636
      %926 = vmatpush.msra.mxu0 %v632
      %927 = vmatpush.msra.mxu0 %v628
      %928 = vmatpush.msra.mxu0 %v624
      %929 = vmatpush.msra.mxu0 %v620
      %930 = vmatpush.msra.mxu0 %v616
      %931 = vmatpush.msra.mxu0 %v612
      %932 = vmatpush.msra.mxu0 %v608
      %933 = vmatpush.msra.mxu0 %v604
      %934 = vmatpush.msra.mxu0 %v600
      %935 = vmatpush.msra.mxu0 %v596
      %936 = vmatpush.msra.mxu0 %v592
      %937 = vmatpush.msra.mxu0 %v588
      %938 = vmatpush.msra.mxu0 %v584
      %939 = vmatpush.msra.mxu0 %v580
      %940 = vmatpush.msra.mxu0 %v576
      %941 = vmatmul.f32.gmra.mxu0 %v899
      %v942 = vpop.f32.mrf.mxu0
      %v943 = vadd.f32 0.0, %v942
      %944 = vdwg.mxu0
      %945 = vmatpush.msra.mxu0 %v637
      %946 = vmatpush.msra.mxu0 %v633
      %947 = vmatpush.msra.mxu0 %v629
      %948 = vmatpush.msra.mxu0 %v625
      %949 = vmatpush.msra.mxu0 %v621
      %950 = vmatpush.msra.mxu0 %v617
      %951 = vmatpush.msra.mxu0 %v613
      %952 = vmatpush.msra.mxu0 %v609
      %953 = vmatpush.msra.mxu0 %v605
      %954 = vmatpush.msra.mxu0 %v601
      %955 = vmatpush.msra.mxu0 %v597
      %956 = vmatpush.msra.mxu0 %v593
      %957 = vmatpush.msra.mxu0 %v589
      %958 = vmatpush.msra.mxu0 %v585
      %959 = vmatpush.msra.mxu0 %v581
      %960 = vmatpush.msra.mxu0 %v577
      %961 = vmatmul.f32.gmra.mxu0 %v899
      %v962 = vpop.f32.mrf.mxu0
      %v963 = vadd.f32 0.0, %v962
      %964 = vdwg.mxu0
      %965 = vmatpush.msra.mxu0 %v638
      %966 = vmatpush.msra.mxu0 %v634
      %967 = vmatpush.msra.mxu0 %v630
      %968 = vmatpush.msra.mxu0 %v626
      %969 = vmatpush.msra.mxu0 %v622
      %970 = vmatpush.msra.mxu0 %v618
      %971 = vmatpush.msra.mxu0 %v614
      %972 = vmatpush.msra.mxu0 %v610
      %973 = vmatpush.msra.mxu0 %v606
      %974 = vmatpush.msra.mxu0 %v602
      %975 = vmatpush.msra.mxu0 %v598
      %976 = vmatpush.msra.mxu0 %v594
      %977 = vmatpush.msra.mxu0 %v590
      %978 = vmatpush.msra.mxu0 %v586
      %979 = vmatpush.msra.mxu0 %v582
      %980 = vmatpush.msra.mxu0 %v578
      %981 = vmatmul.f32.gmra.mxu0 %v899
      %v982 = vpop.f32.mrf.mxu0
      %v983 = vadd.f32 0.0, %v982
      %984 = vdwg.mxu0
      %vm985 = vcmask 261120
      %v987 = vsel %vm985, %v904, 0
      %989 = vmatpush.msra.mxu0 0.0
      %990 = vmatpush.msra.mxu0 0.0
      %991 = vmatpush.msra.mxu0 0.0
      %992 = vmatpush.msra.mxu0 0.0
      %993 = vmatpush.msra.mxu0 0.0
      %994 = vmatpush.msra.mxu0 0.0
      %995 = vmatpush.msra.mxu0 0.0
      %996 = vmatpush.msra.mxu0 0.0
      %997 = vmatpush.msra.mxu0 0.0
      %998 = vmatpush.msra.mxu0 0.0
      %999 = vmatpush.msra.mxu0 0.0
      %1000 = vmatpush.msra.mxu0 0.0
      %1001 = vmatpush.msra.mxu0 %v571
      %1002 = vmatpush.msra.mxu0 %v567
      %1003 = vmatpush.msra.mxu0 %v563
      %1004 = vmatpush.msra.mxu0 %v559
      %1005 = vmatmul.f32.gmra.mxu0 %v987
      %v1006 = vpop.f32.mrf.mxu0
      %v1007 = vadd.f32 %v923, %v1006
      %1008 = vdwg.mxu0
      %1009 = vmatpush.msra.mxu0 0.0
      %1010 = vmatpush.msra.mxu0 0.0
      %1011 = vmatpush.msra.mxu0 0.0
      %1012 = vmatpush.msra.mxu0 0.0
      %1013 = vmatpush.msra.mxu0 0.0
      %1014 = vmatpush.msra.mxu0 0.0
      %1015 = vmatpush.msra.mxu0 0.0
      %1016 = vmatpush.msra.mxu0 0.0
      %1017 = vmatpush.msra.mxu0 0.0
      %1018 = vmatpush.msra.mxu0 0.0
      %1019 = vmatpush.msra.mxu0 0.0
      %1020 = vmatpush.msra.mxu0 0.0
      %1021 = vmatpush.msra.mxu0 %v572
      %1022 = vmatpush.msra.mxu0 %v568
      %1023 = vmatpush.msra.mxu0 %v564
      %1024 = vmatpush.msra.mxu0 %v560
      %1025 = vmatmul.f32.gmra.mxu0 %v987
      %v1026 = vpop.f32.mrf.mxu0
      %v1027 = vadd.f32 %v943, %v1026
      %1028 = vdwg.mxu0
      %1029 = vmatpush.msra.mxu0 0.0
      %1030 = vmatpush.msra.mxu0 0.0
      %1031 = vmatpush.msra.mxu0 0.0
      %1032 = vmatpush.msra.mxu0 0.0
      %1033 = vmatpush.msra.mxu0 0.0
      %1034 = vmatpush.msra.mxu0 0.0
      %1035 = vmatpush.msra.mxu0 0.0
      %1036 = vmatpush.msra.mxu0 0.0
      %1037 = vmatpush.msra.mxu0 0.0
      %1038 = vmatpush.msra.mxu0 0.0
      %1039 = vmatpush.msra.mxu0 0.0
      %1040 = vmatpush.msra.mxu0 0.0
      %1041 = vmatpush.msra.mxu0 %v573
      %1042 = vmatpush.msra.mxu0 %v569
      %1043 = vmatpush.msra.mxu0 %v565
      %1044 = vmatpush.msra.mxu0 %v561
      %1045 = vmatmul.f32.gmra.mxu0 %v987
      %v1046 = vpop.f32.mrf.mxu0
      %v1047 = vadd.f32 %v963, %v1046
      %1048 = vdwg.mxu0
      %1049 = vmatpush.msra.mxu0 0.0
      %1050 = vmatpush.msra.mxu0 0.0
      %1051 = vmatpush.msra.mxu0 0.0
      %1052 = vmatpush.msra.mxu0 0.0
      %1053 = vmatpush.msra.mxu0 0.0
      %1054 = vmatpush.msra.mxu0 0.0
      %1055 = vmatpush.msra.mxu0 0.0
      %1056 = vmatpush.msra.mxu0 0.0
      %1057 = vmatpush.msra.mxu0 0.0
      %1058 = vmatpush.msra.mxu0 0.0
      %1059 = vmatpush.msra.mxu0 0.0
      %1060 = vmatpush.msra.mxu0 0.0
      %1061 = vmatpush.msra.mxu0 %v574
      %1062 = vmatpush.msra.mxu0 %v570
      %1063 = vmatpush.msra.mxu0 %v566
      %1064 = vmatpush.msra.mxu0 %v562
      %1065 = vmatmul.f32.gmra.mxu0 %v987
      %v1066 = vpop.f32.mrf.mxu0
      %v1067 = vadd.f32 %v983, %v1066
      %1068 = vdwg.mxu0
      %v1070 = vperm.slane %v639, 0
      %v1071 = vperm.slane %v639, 1
      %v1072 = vperm.slane %v639, 2
      %v1073 = vperm.slane %v639, 3
      %v1078 = vadd.f32 %v1007, %v1070
      %v1079 = vadd.f32 %v1027, %v1071
      %v1080 = vadd.f32 %v1047, %v1072
      %v1081 = vadd.f32 %v1067, %v1073
      %v1082 = vsub.f32 0.0, %v1078
      %v1083 = vmul.f32 %v1082, 1.442695
      %v1084 = vpow.pop %v1083
      %v1085 = vadd.f32 %v1084, 1.0
      %v1086 = vrcp.pop %v1085
      %v1087 = vmul.f32 %v1085, %v1086
      %v1088 = vsub.f32 1.0, %v1087
      %v1089 = vmul.f32 %v1086, %v1088
      %v1090 = vadd.f32 %v1086, %v1089
      %vm1091 = vweird.f32 %v1085
      %vm1092 = vweird.f32 %v1086
      %vm1093 = vmor %vm1091, %vm1092
      %v1094 = vsel %vm1093, %v1086, %v1090
      %v1095 = vand.u32 2147483647, %v1085
      %vm1096 = vcmp.eq.f32.partialorder %v1095, 8.507059e+37
      %v1097 = vand.u32 %v1085, 2147483648
      %v1098 = vor.u32 1.1754944e-38, %v1097
      %v1099 = vsel %vm1096, %v1098, %v1094
      %v1100 = vmul.f32 1.0, %v1099
      %v1101 = vsub.f32 0.0, %v1079
      %v1102 = vmul.f32 %v1101, 1.442695
      %v1103 = vpow.pop %v1102
      %v1104 = vadd.f32 %v1103, 1.0
      %v1105 = vrcp.pop %v1104
      %v1106 = vmul.f32 %v1104, %v1105
      %v1107 = vsub.f32 1.0, %v1106
      %v1108 = vmul.f32 %v1105, %v1107
      %v1109 = vadd.f32 %v1105, %v1108
      %vm1110 = vweird.f32 %v1104
      %vm1111 = vweird.f32 %v1105
      %vm1112 = vmor %vm1110, %vm1111
      %v1113 = vsel %vm1112, %v1105, %v1109
      %v1114 = vand.u32 2147483647, %v1104
      %vm1115 = vcmp.eq.f32.partialorder %v1114, 8.507059e+37
      %v1116 = vand.u32 %v1104, 2147483648
      %v1117 = vor.u32 1.1754944e-38, %v1116
      %v1118 = vsel %vm1115, %v1117, %v1113
      %v1119 = vmul.f32 1.0, %v1118
      %v1120 = vtanh.pop %v1080
      %v1121 = vsub.f32 0.0, %v1081
      %v1122 = vmul.f32 %v1121, 1.442695
      %v1123 = vpow.pop %v1122
      %v1124 = vadd.f32 %v1123, 1.0
      %v1125 = vrcp.pop %v1124
      %v1126 = vmul.f32 %v1124, %v1125
      %v1127 = vsub.f32 1.0, %v1126
      %v1128 = vmul.f32 %v1125, %v1127
      %v1129 = vadd.f32 %v1125, %v1128
      %vm1130 = vweird.f32 %v1124
      %vm1131 = vweird.f32 %v1125
      %vm1132 = vmor %vm1130, %vm1131
      %v1133 = vsel %vm1132, %v1125, %v1129
      %v1134 = vand.u32 2147483647, %v1124
      %vm1135 = vcmp.eq.f32.partialorder %v1134, 8.507059e+37
      %v1136 = vand.u32 %v1124, 2147483648
      %v1137 = vor.u32 1.1754944e-38, %v1136
      %v1138 = vsel %vm1135, %v1137, %v1133
      %v1139 = vmul.f32 1.0, %v1138
      %v1140 = vmul.f32 %v1119, %v900
      %v1141 = vmul.f32 %v1100, %v1120
      %v1142 = vadd.f32 %v1140, %v1141
      %v1143 = vtanh.pop %v1142
      %v1144 = vmul.f32 %v1139, %v1143
      %s1145 = scalar_lea.vmem [#allocation4], %s902
      %1146 = vst [vmem:[%s1145] sm:$0xf] %v1144
    $region97: #{rcnn_forward.1} parent=1 // loop_footer
      %s898 = sadd.s32 1, %s894
    $region98: #{rcnn_forward.1} parent=1 // loop_footer_branch
      %893 = sbr.rel target = $region94
    $region99: #{rcnn_forward.1} parent=1 // loop_exit
      _
    %v1147 = vld [vmem:[#allocation3] sm:$0xf]
    %v1148 = vld [vmem:[#allocation3 + $0x4] sm:$0xf]
    %v1149 = vld [vmem:[#allocation3 + $0x8] sm:$0xf]
    %v1150 = vld [vmem:[#allocation3 + $0xc] sm:$0xf]
    %v1151 = vld [vmem:[#allocation3 + $0x10] sm:$0xf]
    %v1152 = vld [vmem:[#allocation3 + $0x14] sm:$0xf]
    %v1153 = vld [vmem:[#allocation3 + $0x18] sm:$0xf]
    %v1154 = vld [vmem:[#allocation3 + $0x1c] sm:$0xf]
    %v1155 = vld [vmem:[#allocation3 + $0x20] sm:$0xf]
    %v1156 = vld [vmem:[#allocation3 + $0x24] sm:$0xf]
    %v1157 = vld [vmem:[#allocation3 + $0x28] sm:$0xf]
    %v1158 = vld [vmem:[#allocation3 + $0x2c] sm:$0xf]
    %v1159 = vld [vmem:[#allocation3 + $0x30] sm:$0xf]
    %v1160 = vld [vmem:[#allocation3 + $0x34] sm:$0xf]
    %v1161 = vld [vmem:[#allocation3 + $0x38] sm:$0xf]
    %v1162 = vld [vmem:[#allocation3 + $0x3c] sm:$0xf]
    %v1163 = vld [vmem:[#allocation4] sm:$0xf]
    %v1164 = vld [vmem:[#allocation4 + $0x4] sm:$0xf]
    %v1165 = vld [vmem:[#allocation4 + $0x8] sm:$0xf]
    %v1166 = vld [vmem:[#allocation4 + $0xc] sm:$0xf]
    %v1167 = vld [vmem:[#allocation4 + $0x10] sm:$0xf]
    %v1168 = vld [vmem:[#allocation4 + $0x14] sm:$0xf]
    %v1169 = vld [vmem:[#allocation4 + $0x18] sm:$0xf]
    %v1170 = vld [vmem:[#allocation4 + $0x1c] sm:$0xf]
    %v1171 = vld [vmem:[#allocation4 + $0x20] sm:$0xf]
    %v1172 = vld [vmem:[#allocation4 + $0x24] sm:$0xf]
    %v1173 = vld [vmem:[#allocation4 + $0x28] sm:$0xf]
    %v1174 = vld [vmem:[#allocation4 + $0x2c] sm:$0xf]
    %v1175 = vld [vmem:[#allocation4 + $0x30] sm:$0xf]
    %v1176 = vld [vmem:[#allocation4 + $0x34] sm:$0xf]
    %v1177 = vld [vmem:[#allocation4 + $0x38] sm:$0xf]
    %v1178 = vld [vmem:[#allocation4 + $0x3c] sm:$0xf]
    %v1179 = vld [vmem:[#allocation2] sm:$0xf]
    %v1180 = vld [vmem:[#allocation2 + $0x4] sm:$0xf]
    %v1181 = vld [vmem:[#allocation2 + $0x8] sm:$0xf]
    %v1182 = vld [vmem:[#allocation2 + $0xc] sm:$0xf]
    %v1183 = vld [vmem:[#allocation2 + $0x10] sm:$0xf]
    %v1184 = vld [vmem:[#allocation2 + $0x14] sm:$0xf]
    %v1185 = vld [vmem:[#allocation2 + $0x18] sm:$0xf]
    %v1186 = vld [vmem:[#allocation2 + $0x1c] sm:$0xf]
    %v1187 = vld [vmem:[#allocation2 + $0x20] sm:$0xf]
    %v1188 = vld [vmem:[#allocation2 + $0x24] sm:$0xf]
    %v1189 = vld [vmem:[#allocation2 + $0x28] sm:$0xf]
    %v1190 = vld [vmem:[#allocation2 + $0x2c] sm:$0xf]
    %v1191 = vld [vmem:[#allocation2 + $0x30] sm:$0xf]
    %v1192 = vld [vmem:[#allocation2 + $0x34] sm:$0xf]
    %v1193 = vld [vmem:[#allocation2 + $0x38] sm:$0xf]
    %v1194 = vld [vmem:[#allocation2 + $0x3c] sm:$0xf]
    %v1195 = vld [vmem:[#allocation13] sm:$0xff]
    %v1196 = vld [vmem:[#allocation13 + $0x8] sm:$0xff]
    %v1197 = vld [vmem:[#allocation13 + $0x10] sm:$0xff]
    %v1198 = vld [vmem:[#allocation13 + $0x18] sm:$0xff]
    %v1199 = vld [vmem:[#allocation13 + $0x20] sm:$0xff]
    %v1200 = vld [vmem:[#allocation13 + $0x28] sm:$0xff]
    %v1201 = vld [vmem:[#allocation13 + $0x30] sm:$0xff]
    %v1202 = vld [vmem:[#allocation13 + $0x38] sm:$0xff]
    %v1203 = vld [vmem:[#allocation13 + $0x40] sm:$0xff]
    %v1204 = vld [vmem:[#allocation13 + $0x48] sm:$0xff]
    %v1205 = vld [vmem:[#allocation13 + $0x50] sm:$0xff]
    %v1206 = vld [vmem:[#allocation13 + $0x58] sm:$0xff]
    %v1207 = vld [vmem:[#allocation13 + $0x60] sm:$0xff]
    %v1208 = vld [vmem:[#allocation13 + $0x68] sm:$0xff]
    %v1209 = vld [vmem:[#allocation13 + $0x70] sm:$0xff]
    %v1210 = vld [vmem:[#allocation13 + $0x78] sm:$0xff]
    %v1211 = vld [vmem:[%s9] sm:$0xff]
    %v1212 = vld [vmem:[%s9 + $0x8] sm:$0xff]
    %v1213 = vld [vmem:[%s9 + $0x10] sm:$0xff]
    %v1214 = vld [vmem:[%s9 + $0x18] sm:$0xff]
    %1231 = vst [vmem:[#allocation1] ss:$2 sm:$0xff] %v1179
    %s1232 = scalar_lea.vmem [#allocation1], 1
    %1233 = vst [vmem:[%s1232] ss:$2 sm:$0xff] %v1180
    %s1234 = scalar_lea.vmem [#allocation1], 16
    %1235 = vst [vmem:[%s1234] ss:$2 sm:$0xff] %v1181
    %s1236 = scalar_lea.vmem [#allocation1], 17
    %1237 = vst [vmem:[%s1236] ss:$2 sm:$0xff] %v1182
    %s1238 = scalar_lea.vmem [#allocation1], 32
    %1239 = vst [vmem:[%s1238] ss:$2 sm:$0xff] %v1183
    %s1240 = scalar_lea.vmem [#allocation1], 33
    %1241 = vst [vmem:[%s1240] ss:$2 sm:$0xff] %v1184
    %s1242 = scalar_lea.vmem [#allocation1], 48
    %1243 = vst [vmem:[%s1242] ss:$2 sm:$0xff] %v1185
    %s1244 = scalar_lea.vmem [#allocation1], 49
    %1245 = vst [vmem:[%s1244] ss:$2 sm:$0xff] %v1186
    %v1246 = vld.sshfl [vmem:[#allocation1] sm:$0xff pattern:$0x75316420]
    %v1247 = vld.sshfl [vmem:[#allocation1 + $0x10] sm:$0xff pattern:$0x75316420]
    %v1248 = vld.sshfl [vmem:[#allocation1 + $0x20] sm:$0xff pattern:$0x75316420]
    %v1249 = vld.sshfl [vmem:[#allocation1 + $0x30] sm:$0xff pattern:$0x75316420]
    %1250 = vst [vmem:[#allocation1] ss:$2 sm:$0xff] %v1187
    %1251 = vst [vmem:[%s1232] ss:$2 sm:$0xff] %v1188
    %1252 = vst [vmem:[%s1234] ss:$2 sm:$0xff] %v1189
    %1253 = vst [vmem:[%s1236] ss:$2 sm:$0xff] %v1190
    %1254 = vst [vmem:[%s1238] ss:$2 sm:$0xff] %v1191
    %1255 = vst [vmem:[%s1240] ss:$2 sm:$0xff] %v1192
    %1256 = vst [vmem:[%s1242] ss:$2 sm:$0xff] %v1193
    %1257 = vst [vmem:[%s1244] ss:$2 sm:$0xff] %v1194
    %v1258 = vld.sshfl [vmem:[#allocation1] sm:$0xff pattern:$0x75316420]
    %v1259 = vld.sshfl [vmem:[#allocation1 + $0x10] sm:$0xff pattern:$0x75316420]
    %v1260 = vld.sshfl [vmem:[#allocation1 + $0x20] sm:$0xff pattern:$0x75316420]
    %v1261 = vld.sshfl [vmem:[#allocation1 + $0x30] sm:$0xff pattern:$0x75316420]
    %vm1262 = vcmask 261120
    %v1263 = vsel %vm1262, %v1246, 0
    %v1265 = vsel %vm1262, %v1247, 0
    %v1267 = vsel %vm1262, %v1248, 0
    %v1269 = vsel %vm1262, %v1249, 0
    %v1271 = vsel %vm1262, %v1258, 0
    %v1273 = vsel %vm1262, %v1259, 0
    %v1275 = vsel %vm1262, %v1260, 0
    %v1277 = vsel %vm1262, %v1261, 0
    %1279 = vmatpush.msra.mxu0 0.0
    %1280 = vmatpush.msra.mxu0 0.0
    %1281 = vmatpush.msra.mxu0 0.0
    %1282 = vmatpush.msra.mxu0 0.0
    %1283 = vmatpush.msra.mxu0 0.0
    %1284 = vmatpush.msra.mxu0 0.0
    %1285 = vmatpush.msra.mxu0 0.0
    %1286 = vmatpush.msra.mxu0 0.0
    %1287 = vmatpush.msra.mxu0 0.0
    %1288 = vmatpush.msra.mxu0 0.0
    %1289 = vmatpush.msra.mxu0 0.0
    %1290 = vmatpush.msra.mxu0 0.0
    %1291 = vmatpush.msra.mxu0 %v1214
    %1292 = vmatpush.msra.mxu0 %v1213
    %1293 = vmatpush.msra.mxu0 %v1212
    %1294 = vmatpush.msra.mxu0 %v1211
    %1295 = vmatmul.f32.gmra.mxu0 %v1263
    %v1296 = vpop.f32.mrf.mxu0
    %v1297 = vadd.f32 0.0, %v1296
    %1298 = vmatmul.f32.gmra.mxu0 %v1265
    %v1299 = vpop.f32.mrf.mxu0
    %v1300 = vadd.f32 0.0, %v1299
    %1301 = vmatmul.f32.gmra.mxu0 %v1267
    %v1302 = vpop.f32.mrf.mxu0
    %v1303 = vadd.f32 0.0, %v1302
    %1304 = vmatmul.f32.gmra.mxu0 %v1269
    %v1305 = vpop.f32.mrf.mxu0
    %v1306 = vadd.f32 0.0, %v1305
    %1307 = vmatmul.f32.gmra.mxu0 %v1271
    %v1308 = vpop.f32.mrf.mxu0
    %v1309 = vadd.f32 0.0, %v1308
    %1310 = vmatmul.f32.gmra.mxu0 %v1273
    %v1311 = vpop.f32.mrf.mxu0
    %v1312 = vadd.f32 0.0, %v1311
    %1313 = vmatmul.f32.gmra.mxu0 %v1275
    %v1314 = vpop.f32.mrf.mxu0
    %v1315 = vadd.f32 0.0, %v1314
    %1316 = vmatmul.f32.gmra.mxu0 %v1277
    %v1317 = vpop.f32.mrf.mxu0
    %v1318 = vadd.f32 0.0, %v1317
    %1319 = vdwg.mxu0
    %1336 = vst [vmem:[#allocation1] ss:$2 sm:$0xff] %v1147
    %s1337 = scalar_lea.vmem [#allocation1], 1
    %1338 = vst [vmem:[%s1337] ss:$2 sm:$0xff] %v1148
    %s1339 = scalar_lea.vmem [#allocation1], 16
    %1340 = vst [vmem:[%s1339] ss:$2 sm:$0xff] %v1149
    %s1341 = scalar_lea.vmem [#allocation1], 17
    %1342 = vst [vmem:[%s1341] ss:$2 sm:$0xff] %v1150
    %s1343 = scalar_lea.vmem [#allocation1], 32
    %1344 = vst [vmem:[%s1343] ss:$2 sm:$0xff] %v1151
    %s1345 = scalar_lea.vmem [#allocation1], 33
    %1346 = vst [vmem:[%s1345] ss:$2 sm:$0xff] %v1152
    %s1347 = scalar_lea.vmem [#allocation1], 48
    %1348 = vst [vmem:[%s1347] ss:$2 sm:$0xff] %v1153
    %s1349 = scalar_lea.vmem [#allocation1], 49
    %1350 = vst [vmem:[%s1349] ss:$2 sm:$0xff] %v1154
    %v1351 = vld.sshfl [vmem:[#allocation1] sm:$0xff pattern:$0x75316420]
    %v1352 = vld.sshfl [vmem:[#allocation1 + $0x10] sm:$0xff pattern:$0x75316420]
    %v1353 = vld.sshfl [vmem:[#allocation1 + $0x20] sm:$0xff pattern:$0x75316420]
    %v1354 = vld.sshfl [vmem:[#allocation1 + $0x30] sm:$0xff pattern:$0x75316420]
    %1355 = vst [vmem:[#allocation1] ss:$2 sm:$0xff] %v1155
    %1356 = vst [vmem:[%s1337] ss:$2 sm:$0xff] %v1156
    %1357 = vst [vmem:[%s1339] ss:$2 sm:$0xff] %v1157
    %1358 = vst [vmem:[%s1341] ss:$2 sm:$0xff] %v1158
    %1359 = vst [vmem:[%s1343] ss:$2 sm:$0xff] %v1159
    %1360 = vst [vmem:[%s1345] ss:$2 sm:$0xff] %v1160
    %1361 = vst [vmem:[%s1347] ss:$2 sm:$0xff] %v1161
    %1362 = vst [vmem:[%s1349] ss:$2 sm:$0xff] %v1162
    %v1363 = vld.sshfl [vmem:[#allocation1] sm:$0xff pattern:$0x75316420]
    %v1364 = vld.sshfl [vmem:[#allocation1 + $0x10] sm:$0xff pattern:$0x75316420]
    %v1365 = vld.sshfl [vmem:[#allocation1 + $0x20] sm:$0xff pattern:$0x75316420]
    %v1366 = vld.sshfl [vmem:[#allocation1 + $0x30] sm:$0xff pattern:$0x75316420]
    %1375 = vmatpush.msra.mxu0 %v1210
    %1376 = vmatpush.msra.mxu0 %v1209
    %1377 = vmatpush.msra.mxu0 %v1208
    %1378 = vmatpush.msra.mxu0 %v1207
    %1379 = vmatpush.msra.mxu0 %v1206
    %1380 = vmatpush.msra.mxu0 %v1205
    %1381 = vmatpush.msra.mxu0 %v1204
    %1382 = vmatpush.msra.mxu0 %v1203
    %1383 = vmatpush.msra.mxu0 %v1202
    %1384 = vmatpush.msra.mxu0 %v1201
    %1385 = vmatpush.msra.mxu0 %v1200
    %1386 = vmatpush.msra.mxu0 %v1199
    %1387 = vmatpush.msra.mxu0 %v1198
    %1388 = vmatpush.msra.mxu0 %v1197
    %1389 = vmatpush.msra.mxu0 %v1196
    %1390 = vmatpush.msra.mxu0 %v1195
    %1391 = vmatmul.f32.gmra.mxu0 %v1351
    %v1392 = vpop.f32.mrf.mxu0
    %v1393 = vadd.f32 %v1297, %v1392
    %1394 = vmatmul.f32.gmra.mxu0 %v1352
    %v1395 = vpop.f32.mrf.mxu0
    %v1396 = vadd.f32 %v1300, %v1395
    %1397 = vmatmul.f32.gmra.mxu0 %v1353
    %v1398 = vpop.f32.mrf.mxu0
    %v1399 = vadd.f32 %v1303, %v1398
    %1400 = vmatmul.f32.gmra.mxu0 %v1354
    %v1401 = vpop.f32.mrf.mxu0
    %v1402 = vadd.f32 %v1306, %v1401
    %1403 = vmatmul.f32.gmra.mxu0 %v1363
    %v1404 = vpop.f32.mrf.mxu0
    %v1405 = vadd.f32 %v1309, %v1404
    %1406 = vmatmul.f32.gmra.mxu0 %v1364
    %v1407 = vpop.f32.mrf.mxu0
    %v1408 = vadd.f32 %v1312, %v1407
    %1409 = vmatmul.f32.gmra.mxu0 %v1365
    %v1410 = vpop.f32.mrf.mxu0
    %v1411 = vadd.f32 %v1315, %v1410
    %1412 = vmatmul.f32.gmra.mxu0 %v1366
    %v1413 = vpop.f32.mrf.mxu0
    %v1414 = vadd.f32 %v1318, %v1413
    %1415 = vdwg.mxu0
    %v1416 = vld [vmem:[#allocation14] sm:$0xff]
    %v1417 = vld [vmem:[#allocation14 + $0x8] sm:$0xff]
    %v1418 = vld [vmem:[#allocation14 + $0x10] sm:$0xff]
    %v1419 = vld [vmem:[#allocation14 + $0x18] sm:$0xff]
    %v1420 = vld [vmem:[#allocation14 + $0x20] sm:$0xff]
    %v1421 = vld [vmem:[#allocation14 + $0x28] sm:$0xff]
    %v1422 = vld [vmem:[#allocation14 + $0x30] sm:$0xff]
    %v1423 = vld [vmem:[#allocation14 + $0x38] sm:$0xff]
    %v1424 = vld [vmem:[#allocation14 + $0x40] sm:$0xff]
    %v1425 = vld [vmem:[#allocation14 + $0x48] sm:$0xff]
    %v1426 = vld [vmem:[#allocation14 + $0x50] sm:$0xff]
    %v1427 = vld [vmem:[#allocation14 + $0x58] sm:$0xff]
    %v1428 = vld [vmem:[#allocation14 + $0x60] sm:$0xff]
    %v1429 = vld [vmem:[#allocation14 + $0x68] sm:$0xff]
    %v1430 = vld [vmem:[#allocation14 + $0x70] sm:$0xff]
    %v1431 = vld [vmem:[#allocation14 + $0x78] sm:$0xff]
    %1448 = vst [vmem:[#allocation1] ss:$2 sm:$0xff] %v1163
    %s1449 = scalar_lea.vmem [#allocation1], 1
    %1450 = vst [vmem:[%s1449] ss:$2 sm:$0xff] %v1164
    %s1451 = scalar_lea.vmem [#allocation1], 16
    %1452 = vst [vmem:[%s1451] ss:$2 sm:$0xff] %v1165
    %s1453 = scalar_lea.vmem [#allocation1], 17
    %1454 = vst [vmem:[%s1453] ss:$2 sm:$0xff] %v1166
    %s1455 = scalar_lea.vmem [#allocation1], 32
    %1456 = vst [vmem:[%s1455] ss:$2 sm:$0xff] %v1167
    %s1457 = scalar_lea.vmem [#allocation1], 33
    %1458 = vst [vmem:[%s1457] ss:$2 sm:$0xff] %v1168
    %s1459 = scalar_lea.vmem [#allocation1], 48
    %1460 = vst [vmem:[%s1459] ss:$2 sm:$0xff] %v1169
    %s1461 = scalar_lea.vmem [#allocation1], 49
    %1462 = vst [vmem:[%s1461] ss:$2 sm:$0xff] %v1170
    %v1463 = vld.sshfl [vmem:[#allocation1] sm:$0xff pattern:$0x75316420]
    %v1464 = vld.sshfl [vmem:[#allocation1 + $0x10] sm:$0xff pattern:$0x75316420]
    %v1465 = vld.sshfl [vmem:[#allocation1 + $0x20] sm:$0xff pattern:$0x75316420]
    %v1466 = vld.sshfl [vmem:[#allocation1 + $0x30] sm:$0xff pattern:$0x75316420]
    %1467 = vst [vmem:[#allocation1] ss:$2 sm:$0xff] %v1171
    %1468 = vst [vmem:[%s1449] ss:$2 sm:$0xff] %v1172
    %1469 = vst [vmem:[%s1451] ss:$2 sm:$0xff] %v1173
    %1470 = vst [vmem:[%s1453] ss:$2 sm:$0xff] %v1174
    %1471 = vst [vmem:[%s1455] ss:$2 sm:$0xff] %v1175
    %1472 = vst [vmem:[%s1457] ss:$2 sm:$0xff] %v1176
    %1473 = vst [vmem:[%s1459] ss:$2 sm:$0xff] %v1177
    %1474 = vst [vmem:[%s1461] ss:$2 sm:$0xff] %v1178
    %v1475 = vld.sshfl [vmem:[#allocation1] sm:$0xff pattern:$0x75316420]
    %v1476 = vld.sshfl [vmem:[#allocation1 + $0x10] sm:$0xff pattern:$0x75316420]
    %v1477 = vld.sshfl [vmem:[#allocation1 + $0x20] sm:$0xff pattern:$0x75316420]
    %v1478 = vld.sshfl [vmem:[#allocation1 + $0x30] sm:$0xff pattern:$0x75316420]
    %1487 = vmatpush.msra.mxu0 %v1431
    %1488 = vmatpush.msra.mxu0 %v1430
    %1489 = vmatpush.msra.mxu0 %v1429
    %1490 = vmatpush.msra.mxu0 %v1428
    %1491 = vmatpush.msra.mxu0 %v1427
    %1492 = vmatpush.msra.mxu0 %v1426
    %1493 = vmatpush.msra.mxu0 %v1425
    %1494 = vmatpush.msra.mxu0 %v1424
    %1495 = vmatpush.msra.mxu0 %v1423
    %1496 = vmatpush.msra.mxu0 %v1422
    %1497 = vmatpush.msra.mxu0 %v1421
    %1498 = vmatpush.msra.mxu0 %v1420
    %1499 = vmatpush.msra.mxu0 %v1419
    %1500 = vmatpush.msra.mxu0 %v1418
    %1501 = vmatpush.msra.mxu0 %v1417
    %1502 = vmatpush.msra.mxu0 %v1416
    %1503 = vmatmul.f32.gmra.mxu0 %v1463
    %v1504 = vpop.f32.mrf.mxu0
    %v1505 = vadd.f32 0.0, %v1504
    %1506 = vmatmul.f32.gmra.mxu0 %v1464
    %v1507 = vpop.f32.mrf.mxu0
    %v1508 = vadd.f32 0.0, %v1507
    %1509 = vmatmul.f32.gmra.mxu0 %v1465
    %v1510 = vpop.f32.mrf.mxu0
    %v1511 = vadd.f32 0.0, %v1510
    %1512 = vmatmul.f32.gmra.mxu0 %v1466
    %v1513 = vpop.f32.mrf.mxu0
    %v1514 = vadd.f32 0.0, %v1513
    %1515 = vmatmul.f32.gmra.mxu0 %v1475
    %v1516 = vpop.f32.mrf.mxu0
    %v1517 = vadd.f32 0.0, %v1516
    %1518 = vmatmul.f32.gmra.mxu0 %v1476
    %v1519 = vpop.f32.mrf.mxu0
    %v1520 = vadd.f32 0.0, %v1519
    %1521 = vmatmul.f32.gmra.mxu0 %v1477
    %v1522 = vpop.f32.mrf.mxu0
    %v1523 = vadd.f32 0.0, %v1522
    %1524 = vmatmul.f32.gmra.mxu0 %v1478
    %v1525 = vpop.f32.mrf.mxu0
    %v1526 = vadd.f32 0.0, %v1525
    %1527 = vdwg.mxu0
    %v1528 = vadd.f32 %v1393, %v1505
    %v1529 = vadd.f32 %v1396, %v1508
    %v1530 = vadd.f32 %v1399, %v1511
    %v1531 = vadd.f32 %v1402, %v1514
    %v1532 = vadd.f32 %v1405, %v1517
    %v1533 = vadd.f32 %v1408, %v1520
    %v1534 = vadd.f32 %v1411, %v1523
    %v1535 = vadd.f32 %v1414, %v1526
    %v1536 = vld [vmem:[%s11] sm:$0x1]
    %v1538 = vperm.slane %v1536, 0
    %v1540 = vadd.f32 %v1528, %v1538
    %v1541 = vadd.f32 %v1529, %v1538
    %v1542 = vadd.f32 %v1530, %v1538
    %v1543 = vadd.f32 %v1531, %v1538
    %v1544 = vadd.f32 %v1532, %v1538
    %v1545 = vadd.f32 %v1533, %v1538
    %v1546 = vadd.f32 %v1534, %v1538
    %v1547 = vadd.f32 %v1535, %v1538
    %v1548 = vtanh.pop %v1540
    %v1549 = vtanh.pop %v1541
    %v1550 = vtanh.pop %v1542
    %v1551 = vtanh.pop %v1543
    %v1552 = vtanh.pop %v1544
    %v1553 = vtanh.pop %v1545
    %v1554 = vtanh.pop %v1546
    %v1555 = vtanh.pop %v1547
    %v1564 = vrot.slane %v1548, 4
    %v1565 = vrot.slane %v1549, 4
    %v1566 = vrot.slane %v1550, 4
    %v1567 = vrot.slane %v1551, 4
    %v1568 = vrot.slane %v1552, 4
    %v1569 = vrot.slane %v1553, 4
    %v1570 = vrot.slane %v1554, 4
    %v1571 = vrot.slane %v1555, 4
    %v1580 = vsel %vm392, %v1548, -inf
    %v1581 = vsel %vm392, %v1564, -inf
    %v1582 = vsel %vm392, %v1549, -inf
    %v1583 = vsel %vm392, %v1565, -inf
    %v1584 = vsel %vm392, %v1550, -inf
    %v1585 = vmax.f32 %v1580, %v1584
    %v1586 = vsel %vm392, %v1566, -inf
    %v1587 = vmax.f32 %v1581, %v1586
    %v1588 = vsel %vm392, %v1551, -inf
    %v1589 = vmax.f32 %v1582, %v1588
    %v1590 = vsel %vm392, %v1567, -inf
    %v1591 = vmax.f32 %v1583, %v1590
    %v1592 = vsel %vm392, %v1552, -inf
    %v1593 = vmax.f32 %v1585, %v1592
    %v1594 = vsel %vm392, %v1568, -inf
    %v1595 = vmax.f32 %v1587, %v1594
    %v1596 = vsel %vm392, %v1553, -inf
    %v1597 = vmax.f32 %v1589, %v1596
    %v1598 = vsel %vm392, %v1569, -inf
    %v1599 = vmax.f32 %v1591, %v1598
    %v1600 = vsel %vm392, %v1554, -inf
    %v1601 = vmax.f32 %v1593, %v1600
    %v1602 = vsel %vm392, %v1570, -inf
    %v1603 = vmax.f32 %v1595, %v1602
    %v1604 = vsel %vm392, %v1555, -inf
    %v1605 = vmax.f32 %v1597, %v1604
    %v1606 = vsel %vm392, %v1571, -inf
    %v1607 = vmax.f32 %v1599, %v1606
    %v1608 = vmax.f32 %v1601, %v1603
    %v1609 = vmax.f32 %v1605, %v1607
    %v1610 = vmax.f32 %v1608, %v1609
    %v1611 = vld [vmem:[#allocation16] sm:$0xff]
    %v1612 = vld [vmem:[#allocation16 + $0x8] sm:$0xff]
    %v1613 = vld [vmem:[#allocation16 + $0x10] sm:$0xff]
    %v1614 = vld [vmem:[#allocation16 + $0x18] sm:$0xff]
    %v1615 = vld [vmem:[#allocation16 + $0x20] sm:$0xff]
    %v1616 = vld [vmem:[#allocation16 + $0x28] sm:$0xff]
    %v1617 = vld [vmem:[#allocation16 + $0x30] sm:$0xff]
    %v1618 = vld [vmem:[#allocation16 + $0x38] sm:$0xff]
    %v1619 = vld [vmem:[#allocation16 + $0x40] sm:$0xff]
    %v1620 = vld [vmem:[#allocation16 + $0x48] sm:$0xff]
    %v1621 = vld [vmem:[#allocation16 + $0x50] sm:$0xff]
    %v1622 = vld [vmem:[#allocation16 + $0x58] sm:$0xff]
    %v1623 = vld [vmem:[#allocation16 + $0x60] sm:$0xff]
    %v1624 = vld [vmem:[#allocation16 + $0x68] sm:$0xff]
    %v1625 = vld [vmem:[#allocation16 + $0x70] sm:$0xff]
    %v1626 = vld [vmem:[#allocation16 + $0x78] sm:$0xff]
    %v1627 = vld [vmem:[%s13] sm:$0x1]
    %v1629 = vperm.slane %v1627, 0
    %1631 = vmatpush.msra.mxu0 %v1626
    %1632 = vmatpush.msra.mxu0 %v1625
    %1633 = vmatpush.msra.mxu0 %v1624
    %1634 = vmatpush.msra.mxu0 %v1623
    %1635 = vmatpush.msra.mxu0 %v1622
    %1636 = vmatpush.msra.mxu0 %v1621
    %1637 = vmatpush.msra.mxu0 %v1620
    %1638 = vmatpush.msra.mxu0 %v1619
    %1639 = vmatpush.msra.mxu0 %v1618
    %1640 = vmatpush.msra.mxu0 %v1617
    %1641 = vmatpush.msra.mxu0 %v1616
    %1642 = vmatpush.msra.mxu0 %v1615
    %1643 = vmatpush.msra.mxu0 %v1614
    %1644 = vmatpush.msra.mxu0 %v1613
    %1645 = vmatpush.msra.mxu0 %v1612
    %1646 = vmatpush.msra.mxu0 %v1611
    %1647 = vmatmul.f32.gmra.mxu0 %v1610
    %v1648 = vpop.f32.mrf.mxu0
    %v1649 = vadd.f32 %v1629, %v1648
    %1650 = vdwg.mxu0
    %1651 = vst [vmem:[#allocation17] sm:$0xf] %v1649
    // Predicated region
    $region100: #{rcnn_forward.1} parent=1 // pred_check
      _
    $region101: #{rcnn_forward.1} parent=1 // pred_check_branch
      %1653 = sbr.rel (0) target = $region103
    $region102: #{rcnn_forward.1} parent=1 // pred_region
      %1655 = vsyncadd [#allocation7], 0
      %s1657 = sshll.u32 [#allocation17], 4
      %s1658 = int_to_ptr.vmem [resolvable:$true] %s1657
      %s1659 = sshll.u32 %s14, 4
      %s1660 = int_to_ptr.hbm [resolvable:$true] %s1659
      %1662 = dma.vmem_to_hbm [thread:$0]  %s1658, 64, %s1660, [#allocation7]
    $region103: #{rcnn_forward.1} parent=1 // pred_fallthru
      _
    // Predicated region
    $region104: #{rcnn_forward.1} parent=1 // pred_check
      _
    $region105: #{rcnn_forward.1} parent=1 // pred_check_branch
      %1664 = sbr.rel (0) target = $region107
    $region106: #{rcnn_forward.1} parent=1 // pred_region
      %1666 = dma.done [#allocation7], 64
    $region107: #{rcnn_forward.1} parent=1 // pred_fallthru
      _
    %1667 = vsyncpa [#allocation6], 1
    %1668 = vsyncpa [#allocation9], 1
    %1669 = vsyncpa [#allocation12], 1
    %1670 = vsyncpa [#allocation15], 1
    %1671 = vsyncpa [#allocation7], 1

</llo_original>
